<compile_context>
chip_gen: v7x
topology: tpu7x:2x2x1
jax: 0.10.0
libtpu: 0.0.40
codegen_flags: <defaults>
</compile_context>

<pallas_src>
import jax
import jax.numpy as jnp
from jax.experimental import pallas as pl
from jax.experimental.pallas import tpu as pltpu


def _ceil_to(x, m):
    return ((x + m - 1) // m) * m


def _make_discriminator_kernel(hw_pad, chunk, n_chunks):
    def kernel(scal_ref, t_ref, i_ref, lw_ref, o_ref):
        # scal_ref : SMEM (8,)            [cw0..cw5, conv_bias, lin_bias]
        # t_ref    : VMEM (Bt, 3*hw_pad)  target block, channel-major lane ranges
        # i_ref    : VMEM (Bt, 3*hw_pad)  img block
        # lw_ref   : VMEM (1, hw_pad)     linear weight (zero-padded), lane-major
        # o_ref    : VMEM (Bt, 1)         validity for this block of samples
        cw0 = scal_ref[0]
        cw1 = scal_ref[1]
        cw2 = scal_ref[2]
        cw3 = scal_ref[3]
        cw4 = scal_ref[4]
        cw5 = scal_ref[5]
        cb = scal_ref[6]
        lb = scal_ref[7]

        bt = o_ref.shape[0]
        acc = jnp.zeros((bt, chunk), jnp.float32)

        # Fused conv + LeakyReLU + weighted-sum, one aligned chunk at a time.
        # n_chunks is small and static, so a fully-unrolled static loop gives
        # the scheduler full visibility (same effect as fori_loop(unroll=True))
        # while keeping every slice start a compile-time multiple of 128.
        for c in range(n_chunks):
            off = c * chunk  # static, 128-aligned
            h = cw0 * t_ref[:, pl.ds(off, chunk)]
            h = h + cw1 * t_ref[:, pl.ds(hw_pad + off, chunk)]
            h = h + cw2 * t_ref[:, pl.ds(2 * hw_pad + off, chunk)]
            h = h + cw3 * i_ref[:, pl.ds(off, chunk)]
            h = h + cw4 * i_ref[:, pl.ds(hw_pad + off, chunk)]
            h = h + cw5 * i_ref[:, pl.ds(2 * hw_pad + off, chunk)]
            h = h + cb
            h = jnp.maximum(h, 0.2 * h)  # LeakyReLU(0.2): exact since slope < 1
            # lw's zero-padded tail makes padded lanes contribute 0 exactly.
            acc = acc + h * lw_ref[:, pl.ds(off, chunk)]

        # Single lane (XLU) reduction per sample at the end.
        logit = jnp.sum(acc, axis=-1, keepdims=True) + lb  # (Bt, 1)
        o_ref[...] = jax.nn.sigmoid(logit)

    return kernel


def discriminator_forward(target, img, conv_w, conv_b, lin_w, lin_b):
    """target, img: (B, 3, H, W) float32 (NCHW, matching PyTorch)."""
    B, C, H, W = target.shape
    assert img.shape == target.shape
    HW = H * W

    LANE = 128
    CHUNK = min(1024, _ceil_to(HW, LANE))
    HW_pad = _ceil_to(HW, CHUNK)          # 10000 -> 10240 (10 chunks of 1024)
    n_chunks = HW_pad // CHUNK

    # Batch tile: whole batch for B <= 8; otherwise a multiple of 8, capped at
    # 32 so 2 inputs x 2 double-buffers x Bt x 3*HW_pad*4B stays ~<= 16 MiB
    # (fits v7x's 32 MiB scoped-VMEM default; v5e/v6e have far more headroom).
    if B <= 8:
        Bt = B
    else:
        Bt = min(32, _ceil_to(min(B, 32), 8))
    B_pad = _ceil_to(B, Bt)
    nb = B_pad // Bt

    def to_2d(x):
        x = x.reshape(B, C, HW).astype(jnp.float32)
        if HW_pad != HW:
            x = jnp.pad(x, ((0, 0), (0, 0), (0, HW_pad - HW)))
        x = x.reshape(B, C * HW_pad)
        if B_pad != B:
            x = jnp.pad(x, ((0, B_pad - B), (0, 0)))
        return x

    t2d = to_2d(target)  # (B_pad, 3*HW_pad)
    i2d = to_2d(img)     # (B_pad, 3*HW_pad)

    # All parameter scalars packed into one SMEM array: [cw(6), conv_b, lin_b].
    scalars = jnp.concatenate(
        [conv_w.reshape(-1), conv_b.reshape(-1), lin_b.reshape(-1)]
    ).astype(jnp.float32)                                   # (8,)

    lw = lin_w.reshape(1, HW).astype(jnp.float32)
    if HW_pad != HW:
        lw = jnp.pad(lw, ((0, 0), (0, HW_pad - HW)))        # zero pad keeps dot exact

    kernel = _make_discriminator_kernel(HW_pad, CHUNK, n_chunks)

    out = pl.pallas_call(
        kernel,
        out_shape=jax.ShapeDtypeStruct((B_pad, 1), jnp.float32),
        grid_spec=pltpu.PrefetchScalarGridSpec(
            num_scalar_prefetch=0,
            grid=(nb,),
            in_specs=[
                pl.BlockSpec(memory_space=pltpu.MemorySpace.SMEM),   # scalars
                pl.BlockSpec((Bt, C * HW_pad), lambda b: (b, 0)),    # target block
                pl.BlockSpec((Bt, C * HW_pad), lambda b: (b, 0)),    # img block
                pl.BlockSpec((1, HW_pad), lambda b: (0, 0)),         # linear weight
            ],
            out_specs=pl.BlockSpec((Bt, 1), lambda b: (b, 0)),
        ),
        compiler_params=pltpu.CompilerParams(
            # Batch-block axis is independent; it only shards across TCs once
            # nb >= 2 (B > Bt) -- at tiny B this is a single serial grid step.
            dimension_semantics=("parallel",),
        ),
    )(scalars, t2d, i2d, lw)
    return out[:B]  # (B, 1)


def reference_forward(target, img, conv_w, conv_b, lin_w, lin_b):
    """Pure-JAX reference mirroring the PyTorch module."""
    B = target.shape[0]
    d_in = jnp.concatenate([target, img], axis=1)                     # (B, 6, H, W)
    hidden = jnp.einsum("bchw,c->bhw", d_in, conv_w.reshape(-1)) + conv_b.reshape(())
    hidden = jnp.where(hidden > 0, hidden, 0.2 * hidden)              # LeakyReLU(0.2)
    flat = hidden.reshape(B, -1)                                      # (B, HW)
    logit = flat @ lin_w.reshape(1, -1).T + lin_b.reshape(1, 1)       # (B, 1)
    return jax.nn.sigmoid(logit)


if __name__ == "__main__":
    # The module hard-codes Linear(100*100, 1), so spatial must be 100x100.
    B, C, H, W = 2, 3, 100, 100

    key = jax.random.PRNGKey(0)
    k_t, k_i, k_cw, k_cb, k_lw, k_lb = jax.random.split(key, 6)

    target = jax.random.normal(k_t, (B, C, H, W), dtype=jnp.float32)
    img = jax.random.normal(k_i, (B, C, H, W), dtype=jnp.float32)

    # Parameter shapes match nn.Conv2d(6,1,1) and nn.Linear(100*100, 1).
    conv_w = 0.1 * jax.random.normal(k_cw, (1, 2 * C, 1, 1), dtype=jnp.float32)
    conv_b = 0.1 * jax.random.normal(k_cb, (1,), dtype=jnp.float32)
    lin_w = 0.01 * jax.random.normal(k_lw, (1, H * W), dtype=jnp.float32)
    lin_b = 0.01 * jax.random.normal(k_lb, (1,), dtype=jnp.float32)

    out = discriminator_forward(target, img, conv_w, conv_b, lin_w, lin_b)
    out = jax.block_until_ready(out)

    ref = reference_forward(target, img, conv_w, conv_b, lin_w, lin_b)
    assert out.shape == (B, 1)
    assert jnp.allclose(out, ref, atol=1e-5, rtol=1e-5), (out, ref)

    print("KERNEL_OK")
</pallas_src>

<mosaic_0001>
module attributes {stable_mosaic.version = 11 : i64} {
  func.func @kernel(%arg0: i32, %arg1: memref<8xf32, #tpu.memory_space<smem>>, %arg2: memref<2x30720xf32, #tpu.memory_space<vmem>>, %arg3: memref<2x30720xf32, #tpu.memory_space<vmem>>, %arg4: memref<1x10240xf32, #tpu.memory_space<vmem>>, %arg5: memref<2x1xf32, #tpu.memory_space<vmem>>) attributes {dimension_semantics = [#tpu.dimension_semantics<parallel>], iteration_bounds = array<i64: 1>, scalar_prefetch = 0 : i64, scratch_operands = 0 : i64, tpu.core_type = #tpu.core_type<tc>, window_params = [{transform_indices = @transform_0, window_bounds = array<i64: 8>}, {transform_indices = @transform_1, window_bounds = array<i64: 2, 30720>}, {transform_indices = @transform_2, window_bounds = array<i64: 2, 30720>}, {pipeline_mode = #tpu.pipeline_mode<synchronous>, transform_indices = @transform_3, window_bounds = array<i64: 1, 10240>}, {transform_indices = @transform_4, window_bounds = array<i64: 2, 1>}]} {
    %c0 = arith.constant 0 : index
    %0 = memref.load %arg1[%c0] : memref<8xf32, #tpu.memory_space<smem>>
    %c1 = arith.constant 1 : index
    %1 = memref.load %arg1[%c1] : memref<8xf32, #tpu.memory_space<smem>>
    %c2 = arith.constant 2 : index
    %2 = memref.load %arg1[%c2] : memref<8xf32, #tpu.memory_space<smem>>
    %c3 = arith.constant 3 : index
    %3 = memref.load %arg1[%c3] : memref<8xf32, #tpu.memory_space<smem>>
    %c4 = arith.constant 4 : index
    %4 = memref.load %arg1[%c4] : memref<8xf32, #tpu.memory_space<smem>>
    %c5 = arith.constant 5 : index
    %5 = memref.load %arg1[%c5] : memref<8xf32, #tpu.memory_space<smem>>
    %c6 = arith.constant 6 : index
    %6 = memref.load %arg1[%c6] : memref<8xf32, #tpu.memory_space<smem>>
    %c7 = arith.constant 7 : index
    %7 = memref.load %arg1[%c7] : memref<8xf32, #tpu.memory_space<smem>>
    %cst = arith.constant 0.000000e+00 : f32
    %8 = vector.broadcast %cst : f32 to vector<2x1024xf32>
    %c0_0 = arith.constant 0 : index
    %c0_1 = arith.constant 0 : index
    %9 = vector.load %arg2[%c0_0, %c0_1] : memref<2x30720xf32, #tpu.memory_space<vmem>>, vector<2x1024xf32>
    %10 = vector.broadcast %0 : f32 to vector<2x1024xf32>
    %11 = arith.mulf %10, %9 : vector<2x1024xf32>
    %c0_2 = arith.constant 0 : index
    %c10240 = arith.constant 10240 : index
    %12 = vector.load %arg2[%c0_2, %c10240] : memref<2x30720xf32, #tpu.memory_space<vmem>>, vector<2x1024xf32>
    %13 = vector.broadcast %1 : f32 to vector<2x1024xf32>
    %14 = arith.mulf %13, %12 : vector<2x1024xf32>
    %15 = arith.addf %11, %14 : vector<2x1024xf32>
    %c0_3 = arith.constant 0 : index
    %c20480 = arith.constant 20480 : index
    %16 = vector.load %arg2[%c0_3, %c20480] : memref<2x30720xf32, #tpu.memory_space<vmem>>, vector<2x1024xf32>
    %17 = vector.broadcast %2 : f32 to vector<2x1024xf32>
    %18 = arith.mulf %17, %16 : vector<2x1024xf32>
    %19 = arith.addf %15, %18 : vector<2x1024xf32>
    %c0_4 = arith.constant 0 : index
    %c0_5 = arith.constant 0 : index
    %20 = vector.load %arg3[%c0_4, %c0_5] : memref<2x30720xf32, #tpu.memory_space<vmem>>, vector<2x1024xf32>
    %21 = vector.broadcast %3 : f32 to vector<2x1024xf32>
    %22 = arith.mulf %21, %20 : vector<2x1024xf32>
    %23 = arith.addf %19, %22 : vector<2x1024xf32>
    %c0_6 = arith.constant 0 : index
    %c10240_7 = arith.constant 10240 : index
    %24 = vector.load %arg3[%c0_6, %c10240_7] : memref<2x30720xf32, #tpu.memory_space<vmem>>, vector<2x1024xf32>
    %25 = vector.broadcast %4 : f32 to vector<2x1024xf32>
    %26 = arith.mulf %25, %24 : vector<2x1024xf32>
    %27 = arith.addf %23, %26 : vector<2x1024xf32>
    %c0_8 = arith.constant 0 : index
    %c20480_9 = arith.constant 20480 : index
    %28 = vector.load %arg3[%c0_8, %c20480_9] : memref<2x30720xf32, #tpu.memory_space<vmem>>, vector<2x1024xf32>
    %29 = vector.broadcast %5 : f32 to vector<2x1024xf32>
    %30 = arith.mulf %29, %28 : vector<2x1024xf32>
    %31 = arith.addf %27, %30 : vector<2x1024xf32>
    %32 = vector.broadcast %6 : f32 to vector<2x1024xf32>
    %33 = arith.addf %31, %32 : vector<2x1024xf32>
    %cst_10 = arith.constant 2.000000e-01 : f32
    %34 = vector.broadcast %cst_10 : f32 to vector<2x1024xf32>
    %35 = arith.mulf %34, %33 : vector<2x1024xf32>
    %36 = arith.maximumf %33, %35 : vector<2x1024xf32>
    %c0_11 = arith.constant 0 : index
    %c0_12 = arith.constant 0 : index
    %37 = vector.load %arg4[%c0_11, %c0_12] : memref<1x10240xf32, #tpu.memory_space<vmem>>, vector<1x1024xf32>
    %38 = vector.broadcast %37 : vector<1x1024xf32> to vector<2x1024xf32>
    %39 = arith.mulf %36, %38 : vector<2x1024xf32>
    %40 = arith.addf %8, %39 : vector<2x1024xf32>
    %c0_13 = arith.constant 0 : index
    %c1024 = arith.constant 1024 : index
    %41 = vector.load %arg2[%c0_13, %c1024] : memref<2x30720xf32, #tpu.memory_space<vmem>>, vector<2x1024xf32>
    %42 = vector.broadcast %0 : f32 to vector<2x1024xf32>
    %43 = arith.mulf %42, %41 : vector<2x1024xf32>
    %c0_14 = arith.constant 0 : index
    %c11264 = arith.constant 11264 : index
    %44 = vector.load %arg2[%c0_14, %c11264] : memref<2x30720xf32, #tpu.memory_space<vmem>>, vector<2x1024xf32>
    %45 = vector.broadcast %1 : f32 to vector<2x1024xf32>
    %46 = arith.mulf %45, %44 : vector<2x1024xf32>
    %47 = arith.addf %43, %46 : vector<2x1024xf32>
    %c0_15 = arith.constant 0 : index
    %c21504 = arith.constant 21504 : index
    %48 = vector.load %arg2[%c0_15, %c21504] : memref<2x30720xf32, #tpu.memory_space<vmem>>, vector<2x1024xf32>
    %49 = vector.broadcast %2 : f32 to vector<2x1024xf32>
    %50 = arith.mulf %49, %48 : vector<2x1024xf32>
    %51 = arith.addf %47, %50 : vector<2x1024xf32>
    %c0_16 = arith.constant 0 : index
    %c1024_17 = arith.constant 1024 : index
    %52 = vector.load %arg3[%c0_16, %c1024_17] : memref<2x30720xf32, #tpu.memory_space<vmem>>, vector<2x1024xf32>
    %53 = vector.broadcast %3 : f32 to vector<2x1024xf32>
    %54 = arith.mulf %53, %52 : vector<2x1024xf32>
    %55 = arith.addf %51, %54 : vector<2x1024xf32>
    %c0_18 = arith.constant 0 : index
    %c11264_19 = arith.constant 11264 : index
    %56 = vector.load %arg3[%c0_18, %c11264_19] : memref<2x30720xf32, #tpu.memory_space<vmem>>, vector<2x1024xf32>
    %57 = vector.broadcast %4 : f32 to vector<2x1024xf32>
    %58 = arith.mulf %57, %56 : vector<2x1024xf32>
    %59 = arith.addf %55, %58 : vector<2x1024xf32>
    %c0_20 = arith.constant 0 : index
    %c21504_21 = arith.constant 21504 : index
    %60 = vector.load %arg3[%c0_20, %c21504_21] : memref<2x30720xf32, #tpu.memory_space<vmem>>, vector<2x1024xf32>
    %61 = vector.broadcast %5 : f32 to vector<2x1024xf32>
    %62 = arith.mulf %61, %60 : vector<2x1024xf32>
    %63 = arith.addf %59, %62 : vector<2x1024xf32>
    %64 = vector.broadcast %6 : f32 to vector<2x1024xf32>
    %65 = arith.addf %63, %64 : vector<2x1024xf32>
    %cst_22 = arith.constant 2.000000e-01 : f32
    %66 = vector.broadcast %cst_22 : f32 to vector<2x1024xf32>
    %67 = arith.mulf %66, %65 : vector<2x1024xf32>
    %68 = arith.maximumf %65, %67 : vector<2x1024xf32>
    %c0_23 = arith.constant 0 : index
    %c1024_24 = arith.constant 1024 : index
    %69 = vector.load %arg4[%c0_23, %c1024_24] : memref<1x10240xf32, #tpu.memory_space<vmem>>, vector<1x1024xf32>
    %70 = vector.broadcast %69 : vector<1x1024xf32> to vector<2x1024xf32>
    %71 = arith.mulf %68, %70 : vector<2x1024xf32>
    %72 = arith.addf %40, %71 : vector<2x1024xf32>
    %c0_25 = arith.constant 0 : index
    %c2048 = arith.constant 2048 : index
    %73 = vector.load %arg2[%c0_25, %c2048] : memref<2x30720xf32, #tpu.memory_space<vmem>>, vector<2x1024xf32>
    %74 = vector.broadcast %0 : f32 to vector<2x1024xf32>
    %75 = arith.mulf %74, %73 : vector<2x1024xf32>
    %c0_26 = arith.constant 0 : index
    %c12288 = arith.constant 12288 : index
    %76 = vector.load %arg2[%c0_26, %c12288] : memref<2x30720xf32, #tpu.memory_space<vmem>>, vector<2x1024xf32>
    %77 = vector.broadcast %1 : f32 to vector<2x1024xf32>
    %78 = arith.mulf %77, %76 : vector<2x1024xf32>
    %79 = arith.addf %75, %78 : vector<2x1024xf32>
    %c0_27 = arith.constant 0 : index
    %c22528 = arith.constant 22528 : index
    %80 = vector.load %arg2[%c0_27, %c22528] : memref<2x30720xf32, #tpu.memory_space<vmem>>, vector<2x1024xf32>
    %81 = vector.broadcast %2 : f32 to vector<2x1024xf32>
    %82 = arith.mulf %81, %80 : vector<2x1024xf32>
    %83 = arith.addf %79, %82 : vector<2x1024xf32>
    %c0_28 = arith.constant 0 : index
    %c2048_29 = arith.constant 2048 : index
    %84 = vector.load %arg3[%c0_28, %c2048_29] : memref<2x30720xf32, #tpu.memory_space<vmem>>, vector<2x1024xf32>
    %85 = vector.broadcast %3 : f32 to vector<2x1024xf32>
    %86 = arith.mulf %85, %84 : vector<2x1024xf32>
    %87 = arith.addf %83, %86 : vector<2x1024xf32>
    %c0_30 = arith.constant 0 : index
    %c12288_31 = arith.constant 12288 : index
    %88 = vector.load %arg3[%c0_30, %c12288_31] : memref<2x30720xf32, #tpu.memory_space<vmem>>, vector<2x1024xf32>
    %89 = vector.broadcast %4 : f32 to vector<2x1024xf32>
    %90 = arith.mulf %89, %88 : vector<2x1024xf32>
    %91 = arith.addf %87, %90 : vector<2x1024xf32>
    %c0_32 = arith.constant 0 : index
    %c22528_33 = arith.constant 22528 : index
    %92 = vector.load %arg3[%c0_32, %c22528_33] : memref<2x30720xf32, #tpu.memory_space<vmem>>, vector<2x1024xf32>
    %93 = vector.broadcast %5 : f32 to vector<2x1024xf32>
    %94 = arith.mulf %93, %92 : vector<2x1024xf32>
    %95 = arith.addf %91, %94 : vector<2x1024xf32>
    %96 = vector.broadcast %6 : f32 to vector<2x1024xf32>
    %97 = arith.addf %95, %96 : vector<2x1024xf32>
    %cst_34 = arith.constant 2.000000e-01 : f32
    %98 = vector.broadcast %cst_34 : f32 to vector<2x1024xf32>
    %99 = arith.mulf %98, %97 : vector<2x1024xf32>
    %100 = arith.maximumf %97, %99 : vector<2x1024xf32>
    %c0_35 = arith.constant 0 : index
    %c2048_36 = arith.constant 2048 : index
    %101 = vector.load %arg4[%c0_35, %c2048_36] : memref<1x10240xf32, #tpu.memory_space<vmem>>, vector<1x1024xf32>
    %102 = vector.broadcast %101 : vector<1x1024xf32> to vector<2x1024xf32>
    %103 = arith.mulf %100, %102 : vector<2x1024xf32>
    %104 = arith.addf %72, %103 : vector<2x1024xf32>
    %c0_37 = arith.constant 0 : index
    %c3072 = arith.constant 3072 : index
    %105 = vector.load %arg2[%c0_37, %c3072] : memref<2x30720xf32, #tpu.memory_space<vmem>>, vector<2x1024xf32>
    %106 = vector.broadcast %0 : f32 to vector<2x1024xf32>
    %107 = arith.mulf %106, %105 : vector<2x1024xf32>
    %c0_38 = arith.constant 0 : index
    %c13312 = arith.constant 13312 : index
    %108 = vector.load %arg2[%c0_38, %c13312] : memref<2x30720xf32, #tpu.memory_space<vmem>>, vector<2x1024xf32>
    %109 = vector.broadcast %1 : f32 to vector<2x1024xf32>
    %110 = arith.mulf %109, %108 : vector<2x1024xf32>
    %111 = arith.addf %107, %110 : vector<2x1024xf32>
    %c0_39 = arith.constant 0 : index
    %c23552 = arith.constant 23552 : index
    %112 = vector.load %arg2[%c0_39, %c23552] : memref<2x30720xf32, #tpu.memory_space<vmem>>, vector<2x1024xf32>
    %113 = vector.broadcast %2 : f32 to vector<2x1024xf32>
    %114 = arith.mulf %113, %112 : vector<2x1024xf32>
    %115 = arith.addf %111, %114 : vector<2x1024xf32>
    %c0_40 = arith.constant 0 : index
    %c3072_41 = arith.constant 3072 : index
    %116 = vector.load %arg3[%c0_40, %c3072_41] : memref<2x30720xf32, #tpu.memory_space<vmem>>, vector<2x1024xf32>
    %117 = vector.broadcast %3 : f32 to vector<2x1024xf32>
    %118 = arith.mulf %117, %116 : vector<2x1024xf32>
    %119 = arith.addf %115, %118 : vector<2x1024xf32>
    %c0_42 = arith.constant 0 : index
    %c13312_43 = arith.constant 13312 : index
    %120 = vector.load %arg3[%c0_42, %c13312_43] : memref<2x30720xf32, #tpu.memory_space<vmem>>, vector<2x1024xf32>
    %121 = vector.broadcast %4 : f32 to vector<2x1024xf32>
    %122 = arith.mulf %121, %120 : vector<2x1024xf32>
    %123 = arith.addf %119, %122 : vector<2x1024xf32>
    %c0_44 = arith.constant 0 : index
    %c23552_45 = arith.constant 23552 : index
    %124 = vector.load %arg3[%c0_44, %c23552_45] : memref<2x30720xf32, #tpu.memory_space<vmem>>, vector<2x1024xf32>
    %125 = vector.broadcast %5 : f32 to vector<2x1024xf32>
    %126 = arith.mulf %125, %124 : vector<2x1024xf32>
    %127 = arith.addf %123, %126 : vector<2x1024xf32>
    %128 = vector.broadcast %6 : f32 to vector<2x1024xf32>
    %129 = arith.addf %127, %128 : vector<2x1024xf32>
    %cst_46 = arith.constant 2.000000e-01 : f32
    %130 = vector.broadcast %cst_46 : f32 to vector<2x1024xf32>
    %131 = arith.mulf %130, %129 : vector<2x1024xf32>
    %132 = arith.maximumf %129, %131 : vector<2x1024xf32>
    %c0_47 = arith.constant 0 : index
    %c3072_48 = arith.constant 3072 : index
    %133 = vector.load %arg4[%c0_47, %c3072_48] : memref<1x10240xf32, #tpu.memory_space<vmem>>, vector<1x1024xf32>
    %134 = vector.broadcast %133 : vector<1x1024xf32> to vector<2x1024xf32>
    %135 = arith.mulf %132, %134 : vector<2x1024xf32>
    %136 = arith.addf %104, %135 : vector<2x1024xf32>
    %c0_49 = arith.constant 0 : index
    %c4096 = arith.constant 4096 : index
    %137 = vector.load %arg2[%c0_49, %c4096] : memref<2x30720xf32, #tpu.memory_space<vmem>>, vector<2x1024xf32>
    %138 = vector.broadcast %0 : f32 to vector<2x1024xf32>
    %139 = arith.mulf %138, %137 : vector<2x1024xf32>
    %c0_50 = arith.constant 0 : index
    %c14336 = arith.constant 14336 : index
    %140 = vector.load %arg2[%c0_50, %c14336] : memref<2x30720xf32, #tpu.memory_space<vmem>>, vector<2x1024xf32>
    %141 = vector.broadcast %1 : f32 to vector<2x1024xf32>
    %142 = arith.mulf %141, %140 : vector<2x1024xf32>
    %143 = arith.addf %139, %142 : vector<2x1024xf32>
    %c0_51 = arith.constant 0 : index
    %c24576 = arith.constant 24576 : index
    %144 = vector.load %arg2[%c0_51, %c24576] : memref<2x30720xf32, #tpu.memory_space<vmem>>, vector<2x1024xf32>
    %145 = vector.broadcast %2 : f32 to vector<2x1024xf32>
    %146 = arith.mulf %145, %144 : vector<2x1024xf32>
    %147 = arith.addf %143, %146 : vector<2x1024xf32>
    %c0_52 = arith.constant 0 : index
    %c4096_53 = arith.constant 4096 : index
    %148 = vector.load %arg3[%c0_52, %c4096_53] : memref<2x30720xf32, #tpu.memory_space<vmem>>, vector<2x1024xf32>
    %149 = vector.broadcast %3 : f32 to vector<2x1024xf32>
    %150 = arith.mulf %149, %148 : vector<2x1024xf32>
    %151 = arith.addf %147, %150 : vector<2x1024xf32>
    %c0_54 = arith.constant 0 : index
    %c14336_55 = arith.constant 14336 : index
    %152 = vector.load %arg3[%c0_54, %c14336_55] : memref<2x30720xf32, #tpu.memory_space<vmem>>, vector<2x1024xf32>
    %153 = vector.broadcast %4 : f32 to vector<2x1024xf32>
    %154 = arith.mulf %153, %152 : vector<2x1024xf32>
    %155 = arith.addf %151, %154 : vector<2x1024xf32>
    %c0_56 = arith.constant 0 : index
    %c24576_57 = arith.constant 24576 : index
    %156 = vector.load %arg3[%c0_56, %c24576_57] : memref<2x30720xf32, #tpu.memory_space<vmem>>, vector<2x1024xf32>
    %157 = vector.broadcast %5 : f32 to vector<2x1024xf32>
    %158 = arith.mulf %157, %156 : vector<2x1024xf32>
    %159 = arith.addf %155, %158 : vector<2x1024xf32>
    %160 = vector.broadcast %6 : f32 to vector<2x1024xf32>
    %161 = arith.addf %159, %160 : vector<2x1024xf32>
    %cst_58 = arith.constant 2.000000e-01 : f32
    %162 = vector.broadcast %cst_58 : f32 to vector<2x1024xf32>
    %163 = arith.mulf %162, %161 : vector<2x1024xf32>
    %164 = arith.maximumf %161, %163 : vector<2x1024xf32>
    %c0_59 = arith.constant 0 : index
    %c4096_60 = arith.constant 4096 : index
    %165 = vector.load %arg4[%c0_59, %c4096_60] : memref<1x10240xf32, #tpu.memory_space<vmem>>, vector<1x1024xf32>
    %166 = vector.broadcast %165 : vector<1x1024xf32> to vector<2x1024xf32>
    %167 = arith.mulf %164, %166 : vector<2x1024xf32>
    %168 = arith.addf %136, %167 : vector<2x1024xf32>
    %c0_61 = arith.constant 0 : index
    %c5120 = arith.constant 5120 : index
    %169 = vector.load %arg2[%c0_61, %c5120] : memref<2x30720xf32, #tpu.memory_space<vmem>>, vector<2x1024xf32>
    %170 = vector.broadcast %0 : f32 to vector<2x1024xf32>
    %171 = arith.mulf %170, %169 : vector<2x1024xf32>
    %c0_62 = arith.constant 0 : index
    %c15360 = arith.constant 15360 : index
    %172 = vector.load %arg2[%c0_62, %c15360] : memref<2x30720xf32, #tpu.memory_space<vmem>>, vector<2x1024xf32>
    %173 = vector.broadcast %1 : f32 to vector<2x1024xf32>
    %174 = arith.mulf %173, %172 : vector<2x1024xf32>
    %175 = arith.addf %171, %174 : vector<2x1024xf32>
    %c0_63 = arith.constant 0 : index
    %c25600 = arith.constant 25600 : index
    %176 = vector.load %arg2[%c0_63, %c25600] : memref<2x30720xf32, #tpu.memory_space<vmem>>, vector<2x1024xf32>
    %177 = vector.broadcast %2 : f32 to vector<2x1024xf32>
    %178 = arith.mulf %177, %176 : vector<2x1024xf32>
    %179 = arith.addf %175, %178 : vector<2x1024xf32>
    %c0_64 = arith.constant 0 : index
    %c5120_65 = arith.constant 5120 : index
    %180 = vector.load %arg3[%c0_64, %c5120_65] : memref<2x30720xf32, #tpu.memory_space<vmem>>, vector<2x1024xf32>
    %181 = vector.broadcast %3 : f32 to vector<2x1024xf32>
    %182 = arith.mulf %181, %180 : vector<2x1024xf32>
    %183 = arith.addf %179, %182 : vector<2x1024xf32>
    %c0_66 = arith.constant 0 : index
    %c15360_67 = arith.constant 15360 : index
    %184 = vector.load %arg3[%c0_66, %c15360_67] : memref<2x30720xf32, #tpu.memory_space<vmem>>, vector<2x1024xf32>
    %185 = vector.broadcast %4 : f32 to vector<2x1024xf32>
    %186 = arith.mulf %185, %184 : vector<2x1024xf32>
    %187 = arith.addf %183, %186 : vector<2x1024xf32>
    %c0_68 = arith.constant 0 : index
    %c25600_69 = arith.constant 25600 : index
    %188 = vector.load %arg3[%c0_68, %c25600_69] : memref<2x30720xf32, #tpu.memory_space<vmem>>, vector<2x1024xf32>
    %189 = vector.broadcast %5 : f32 to vector<2x1024xf32>
    %190 = arith.mulf %189, %188 : vector<2x1024xf32>
    %191 = arith.addf %187, %190 : vector<2x1024xf32>
    %192 = vector.broadcast %6 : f32 to vector<2x1024xf32>
    %193 = arith.addf %191, %192 : vector<2x1024xf32>
    %cst_70 = arith.constant 2.000000e-01 : f32
    %194 = vector.broadcast %cst_70 : f32 to vector<2x1024xf32>
    %195 = arith.mulf %194, %193 : vector<2x1024xf32>
    %196 = arith.maximumf %193, %195 : vector<2x1024xf32>
    %c0_71 = arith.constant 0 : index
    %c5120_72 = arith.constant 5120 : index
    %197 = vector.load %arg4[%c0_71, %c5120_72] : memref<1x10240xf32, #tpu.memory_space<vmem>>, vector<1x1024xf32>
    %198 = vector.broadcast %197 : vector<1x1024xf32> to vector<2x1024xf32>
    %199 = arith.mulf %196, %198 : vector<2x1024xf32>
    %200 = arith.addf %168, %199 : vector<2x1024xf32>
    %c0_73 = arith.constant 0 : index
    %c6144 = arith.constant 6144 : index
    %201 = vector.load %arg2[%c0_73, %c6144] : memref<2x30720xf32, #tpu.memory_space<vmem>>, vector<2x1024xf32>
    %202 = vector.broadcast %0 : f32 to vector<2x1024xf32>
    %203 = arith.mulf %202, %201 : vector<2x1024xf32>
    %c0_74 = arith.constant 0 : index
    %c16384 = arith.constant 16384 : index
    %204 = vector.load %arg2[%c0_74, %c16384] : memref<2x30720xf32, #tpu.memory_space<vmem>>, vector<2x1024xf32>
    %205 = vector.broadcast %1 : f32 to vector<2x1024xf32>
    %206 = arith.mulf %205, %204 : vector<2x1024xf32>
    %207 = arith.addf %203, %206 : vector<2x1024xf32>
    %c0_75 = arith.constant 0 : index
    %c26624 = arith.constant 26624 : index
    %208 = vector.load %arg2[%c0_75, %c26624] : memref<2x30720xf32, #tpu.memory_space<vmem>>, vector<2x1024xf32>
    %209 = vector.broadcast %2 : f32 to vector<2x1024xf32>
    %210 = arith.mulf %209, %208 : vector<2x1024xf32>
    %211 = arith.addf %207, %210 : vector<2x1024xf32>
    %c0_76 = arith.constant 0 : index
    %c6144_77 = arith.constant 6144 : index
    %212 = vector.load %arg3[%c0_76, %c6144_77] : memref<2x30720xf32, #tpu.memory_space<vmem>>, vector<2x1024xf32>
    %213 = vector.broadcast %3 : f32 to vector<2x1024xf32>
    %214 = arith.mulf %213, %212 : vector<2x1024xf32>
    %215 = arith.addf %211, %214 : vector<2x1024xf32>
    %c0_78 = arith.constant 0 : index
    %c16384_79 = arith.constant 16384 : index
    %216 = vector.load %arg3[%c0_78, %c16384_79] : memref<2x30720xf32, #tpu.memory_space<vmem>>, vector<2x1024xf32>
    %217 = vector.broadcast %4 : f32 to vector<2x1024xf32>
    %218 = arith.mulf %217, %216 : vector<2x1024xf32>
    %219 = arith.addf %215, %218 : vector<2x1024xf32>
    %c0_80 = arith.constant 0 : index
    %c26624_81 = arith.constant 26624 : index
    %220 = vector.load %arg3[%c0_80, %c26624_81] : memref<2x30720xf32, #tpu.memory_space<vmem>>, vector<2x1024xf32>
    %221 = vector.broadcast %5 : f32 to vector<2x1024xf32>
    %222 = arith.mulf %221, %220 : vector<2x1024xf32>
    %223 = arith.addf %219, %222 : vector<2x1024xf32>
    %224 = vector.broadcast %6 : f32 to vector<2x1024xf32>
    %225 = arith.addf %223, %224 : vector<2x1024xf32>
    %cst_82 = arith.constant 2.000000e-01 : f32
    %226 = vector.broadcast %cst_82 : f32 to vector<2x1024xf32>
    %227 = arith.mulf %226, %225 : vector<2x1024xf32>
    %228 = arith.maximumf %225, %227 : vector<2x1024xf32>
    %c0_83 = arith.constant 0 : index
    %c6144_84 = arith.constant 6144 : index
    %229 = vector.load %arg4[%c0_83, %c6144_84] : memref<1x10240xf32, #tpu.memory_space<vmem>>, vector<1x1024xf32>
    %230 = vector.broadcast %229 : vector<1x1024xf32> to vector<2x1024xf32>
    %231 = arith.mulf %228, %230 : vector<2x1024xf32>
    %232 = arith.addf %200, %231 : vector<2x1024xf32>
    %c0_85 = arith.constant 0 : index
    %c7168 = arith.constant 7168 : index
    %233 = vector.load %arg2[%c0_85, %c7168] : memref<2x30720xf32, #tpu.memory_space<vmem>>, vector<2x1024xf32>
    %234 = vector.broadcast %0 : f32 to vector<2x1024xf32>
    %235 = arith.mulf %234, %233 : vector<2x1024xf32>
    %c0_86 = arith.constant 0 : index
    %c17408 = arith.constant 17408 : index
    %236 = vector.load %arg2[%c0_86, %c17408] : memref<2x30720xf32, #tpu.memory_space<vmem>>, vector<2x1024xf32>
    %237 = vector.broadcast %1 : f32 to vector<2x1024xf32>
    %238 = arith.mulf %237, %236 : vector<2x1024xf32>
    %239 = arith.addf %235, %238 : vector<2x1024xf32>
    %c0_87 = arith.constant 0 : index
    %c27648 = arith.constant 27648 : index
    %240 = vector.load %arg2[%c0_87, %c27648] : memref<2x30720xf32, #tpu.memory_space<vmem>>, vector<2x1024xf32>
    %241 = vector.broadcast %2 : f32 to vector<2x1024xf32>
    %242 = arith.mulf %241, %240 : vector<2x1024xf32>
    %243 = arith.addf %239, %242 : vector<2x1024xf32>
    %c0_88 = arith.constant 0 : index
    %c7168_89 = arith.constant 7168 : index
    %244 = vector.load %arg3[%c0_88, %c7168_89] : memref<2x30720xf32, #tpu.memory_space<vmem>>, vector<2x1024xf32>
    %245 = vector.broadcast %3 : f32 to vector<2x1024xf32>
    %246 = arith.mulf %245, %244 : vector<2x1024xf32>
    %247 = arith.addf %243, %246 : vector<2x1024xf32>
    %c0_90 = arith.constant 0 : index
    %c17408_91 = arith.constant 17408 : index
    %248 = vector.load %arg3[%c0_90, %c17408_91] : memref<2x30720xf32, #tpu.memory_space<vmem>>, vector<2x1024xf32>
    %249 = vector.broadcast %4 : f32 to vector<2x1024xf32>
    %250 = arith.mulf %249, %248 : vector<2x1024xf32>
    %251 = arith.addf %247, %250 : vector<2x1024xf32>
    %c0_92 = arith.constant 0 : index
    %c27648_93 = arith.constant 27648 : index
    %252 = vector.load %arg3[%c0_92, %c27648_93] : memref<2x30720xf32, #tpu.memory_space<vmem>>, vector<2x1024xf32>
    %253 = vector.broadcast %5 : f32 to vector<2x1024xf32>
    %254 = arith.mulf %253, %252 : vector<2x1024xf32>
    %255 = arith.addf %251, %254 : vector<2x1024xf32>
    %256 = vector.broadcast %6 : f32 to vector<2x1024xf32>
    %257 = arith.addf %255, %256 : vector<2x1024xf32>
    %cst_94 = arith.constant 2.000000e-01 : f32
    %258 = vector.broadcast %cst_94 : f32 to vector<2x1024xf32>
    %259 = arith.mulf %258, %257 : vector<2x1024xf32>
    %260 = arith.maximumf %257, %259 : vector<2x1024xf32>
    %c0_95 = arith.constant 0 : index
    %c7168_96 = arith.constant 7168 : index
    %261 = vector.load %arg4[%c0_95, %c7168_96] : memref<1x10240xf32, #tpu.memory_space<vmem>>, vector<1x1024xf32>
    %262 = vector.broadcast %261 : vector<1x1024xf32> to vector<2x1024xf32>
    %263 = arith.mulf %260, %262 : vector<2x1024xf32>
    %264 = arith.addf %232, %263 : vector<2x1024xf32>
    %c0_97 = arith.constant 0 : index
    %c8192 = arith.constant 8192 : index
    %265 = vector.load %arg2[%c0_97, %c8192] : memref<2x30720xf32, #tpu.memory_space<vmem>>, vector<2x1024xf32>
    %266 = vector.broadcast %0 : f32 to vector<2x1024xf32>
    %267 = arith.mulf %266, %265 : vector<2x1024xf32>
    %c0_98 = arith.constant 0 : index
    %c18432 = arith.constant 18432 : index
    %268 = vector.load %arg2[%c0_98, %c18432] : memref<2x30720xf32, #tpu.memory_space<vmem>>, vector<2x1024xf32>
    %269 = vector.broadcast %1 : f32 to vector<2x1024xf32>
    %270 = arith.mulf %269, %268 : vector<2x1024xf32>
    %271 = arith.addf %267, %270 : vector<2x1024xf32>
    %c0_99 = arith.constant 0 : index
    %c28672 = arith.constant 28672 : index
    %272 = vector.load %arg2[%c0_99, %c28672] : memref<2x30720xf32, #tpu.memory_space<vmem>>, vector<2x1024xf32>
    %273 = vector.broadcast %2 : f32 to vector<2x1024xf32>
    %274 = arith.mulf %273, %272 : vector<2x1024xf32>
    %275 = arith.addf %271, %274 : vector<2x1024xf32>
    %c0_100 = arith.constant 0 : index
    %c8192_101 = arith.constant 8192 : index
    %276 = vector.load %arg3[%c0_100, %c8192_101] : memref<2x30720xf32, #tpu.memory_space<vmem>>, vector<2x1024xf32>
    %277 = vector.broadcast %3 : f32 to vector<2x1024xf32>
    %278 = arith.mulf %277, %276 : vector<2x1024xf32>
    %279 = arith.addf %275, %278 : vector<2x1024xf32>
    %c0_102 = arith.constant 0 : index
    %c18432_103 = arith.constant 18432 : index
    %280 = vector.load %arg3[%c0_102, %c18432_103] : memref<2x30720xf32, #tpu.memory_space<vmem>>, vector<2x1024xf32>
    %281 = vector.broadcast %4 : f32 to vector<2x1024xf32>
    %282 = arith.mulf %281, %280 : vector<2x1024xf32>
    %283 = arith.addf %279, %282 : vector<2x1024xf32>
    %c0_104 = arith.constant 0 : index
    %c28672_105 = arith.constant 28672 : index
    %284 = vector.load %arg3[%c0_104, %c28672_105] : memref<2x30720xf32, #tpu.memory_space<vmem>>, vector<2x1024xf32>
    %285 = vector.broadcast %5 : f32 to vector<2x1024xf32>
    %286 = arith.mulf %285, %284 : vector<2x1024xf32>
    %287 = arith.addf %283, %286 : vector<2x1024xf32>
    %288 = vector.broadcast %6 : f32 to vector<2x1024xf32>
    %289 = arith.addf %287, %288 : vector<2x1024xf32>
    %cst_106 = arith.constant 2.000000e-01 : f32
    %290 = vector.broadcast %cst_106 : f32 to vector<2x1024xf32>
    %291 = arith.mulf %290, %289 : vector<2x1024xf32>
    %292 = arith.maximumf %289, %291 : vector<2x1024xf32>
    %c0_107 = arith.constant 0 : index
    %c8192_108 = arith.constant 8192 : index
    %293 = vector.load %arg4[%c0_107, %c8192_108] : memref<1x10240xf32, #tpu.memory_space<vmem>>, vector<1x1024xf32>
    %294 = vector.broadcast %293 : vector<1x1024xf32> to vector<2x1024xf32>
    %295 = arith.mulf %292, %294 : vector<2x1024xf32>
    %296 = arith.addf %264, %295 : vector<2x1024xf32>
    %c0_109 = arith.constant 0 : index
    %c9216 = arith.constant 9216 : index
    %297 = vector.load %arg2[%c0_109, %c9216] : memref<2x30720xf32, #tpu.memory_space<vmem>>, vector<2x1024xf32>
    %298 = vector.broadcast %0 : f32 to vector<2x1024xf32>
    %299 = arith.mulf %298, %297 : vector<2x1024xf32>
    %c0_110 = arith.constant 0 : index
    %c19456 = arith.constant 19456 : index
    %300 = vector.load %arg2[%c0_110, %c19456] : memref<2x30720xf32, #tpu.memory_space<vmem>>, vector<2x1024xf32>
    %301 = vector.broadcast %1 : f32 to vector<2x1024xf32>
    %302 = arith.mulf %301, %300 : vector<2x1024xf32>
    %303 = arith.addf %299, %302 : vector<2x1024xf32>
    %c0_111 = arith.constant 0 : index
    %c29696 = arith.constant 29696 : index
    %304 = vector.load %arg2[%c0_111, %c29696] : memref<2x30720xf32, #tpu.memory_space<vmem>>, vector<2x1024xf32>
    %305 = vector.broadcast %2 : f32 to vector<2x1024xf32>
    %306 = arith.mulf %305, %304 : vector<2x1024xf32>
    %307 = arith.addf %303, %306 : vector<2x1024xf32>
    %c0_112 = arith.constant 0 : index
    %c9216_113 = arith.constant 9216 : index
    %308 = vector.load %arg3[%c0_112, %c9216_113] : memref<2x30720xf32, #tpu.memory_space<vmem>>, vector<2x1024xf32>
    %309 = vector.broadcast %3 : f32 to vector<2x1024xf32>
    %310 = arith.mulf %309, %308 : vector<2x1024xf32>
    %311 = arith.addf %307, %310 : vector<2x1024xf32>
    %c0_114 = arith.constant 0 : index
    %c19456_115 = arith.constant 19456 : index
    %312 = vector.load %arg3[%c0_114, %c19456_115] : memref<2x30720xf32, #tpu.memory_space<vmem>>, vector<2x1024xf32>
    %313 = vector.broadcast %4 : f32 to vector<2x1024xf32>
    %314 = arith.mulf %313, %312 : vector<2x1024xf32>
    %315 = arith.addf %311, %314 : vector<2x1024xf32>
    %c0_116 = arith.constant 0 : index
    %c29696_117 = arith.constant 29696 : index
    %316 = vector.load %arg3[%c0_116, %c29696_117] : memref<2x30720xf32, #tpu.memory_space<vmem>>, vector<2x1024xf32>
    %317 = vector.broadcast %5 : f32 to vector<2x1024xf32>
    %318 = arith.mulf %317, %316 : vector<2x1024xf32>
    %319 = arith.addf %315, %318 : vector<2x1024xf32>
    %320 = vector.broadcast %6 : f32 to vector<2x1024xf32>
    %321 = arith.addf %319, %320 : vector<2x1024xf32>
    %cst_118 = arith.constant 2.000000e-01 : f32
    %322 = vector.broadcast %cst_118 : f32 to vector<2x1024xf32>
    %323 = arith.mulf %322, %321 : vector<2x1024xf32>
    %324 = arith.maximumf %321, %323 : vector<2x1024xf32>
    %c0_119 = arith.constant 0 : index
    %c9216_120 = arith.constant 9216 : index
    %325 = vector.load %arg4[%c0_119, %c9216_120] : memref<1x10240xf32, #tpu.memory_space<vmem>>, vector<1x1024xf32>
    %326 = vector.broadcast %325 : vector<1x1024xf32> to vector<2x1024xf32>
    %327 = arith.mulf %324, %326 : vector<2x1024xf32>
    %328 = arith.addf %296, %327 : vector<2x1024xf32>
    %cst_121 = arith.constant dense<0.000000e+00> : vector<2xf32>
    %329 = vector.multi_reduction <add>, %328, %cst_121 [1] : vector<2x1024xf32> to vector<2xf32>
    %330 = vector.shape_cast %329 : vector<2xf32> to vector<2x1xf32>
    %331 = vector.broadcast %7 : f32 to vector<2x1xf32>
    %332 = arith.addf %330, %331 : vector<2x1xf32>
    %333 = arith.negf %332 : vector<2x1xf32>
    %334 = math.exp %333 : vector<2x1xf32>
    %cst_122 = arith.constant 1.000000e+00 : f32
    %335 = vector.broadcast %cst_122 : f32 to vector<2x1xf32>
    %336 = arith.addf %335, %334 : vector<2x1xf32>
    %337 = arith.divf %335, %336 : vector<2x1xf32>
    %c0_123 = arith.constant 0 : index
    %c0_124 = arith.constant 0 : index
    %338 = vector.load %arg5[%c0_123, %c0_124] : memref<2x1xf32, #tpu.memory_space<vmem>>, vector<2x1xf32>
    tpu.vector_store %arg5[%c0_123, %c0_124], %337 {strides = array<i32>} : memref<2x1xf32, #tpu.memory_space<vmem>>, vector<2x1xf32>,
    return
  }
  func.func @transform_0(%arg0: i32) -> i32 {
    %c0_i32 = arith.constant 0 : i32
    %c0_i32_0 = arith.constant 0 : i32
    return %c0_i32 : i32
  }
  func.func @transform_1(%arg0: i32) -> (i32, i32) {
    %c0_i32 = arith.constant 0 : i32
    %c0_i32_0 = arith.constant 0 : i32
    return %arg0, %c0_i32 : i32, i32
  }
  func.func @transform_2(%arg0: i32) -> (i32, i32) {
    %c0_i32 = arith.constant 0 : i32
    %c0_i32_0 = arith.constant 0 : i32
    return %arg0, %c0_i32 : i32, i32
  }
  func.func @transform_3(%arg0: i32) -> (i32, i32) {
    %c0_i32 = arith.constant 0 : i32
    %c0_i32_0 = arith.constant 0 : i32
    %c0_i32_1 = arith.constant 0 : i32
    return %c0_i32, %c0_i32_0 : i32, i32
  }
  func.func @transform_4(%arg0: i32) -> (i32, i32) {
    %c0_i32 = arith.constant 0 : i32
    %c0_i32_0 = arith.constant 0 : i32
    return %arg0, %c0_i32 : i32, i32
  }
}

</mosaic_0001>

<llo_original>
// kernel: tpu_custom_call.1
$region0: #{tpu_custom_call.1}
  #allocation0 [shape = 'u32[]', space=smem, size = 0x4, offset = 0x4, fixed_abs, tag = 'smem constant byte address 0x4 - core index']
  #allocation1 [shape = 'u32[144,128]{1,0:T(1,128)}', space=vmem, size = 0x12000, scoped, tag = 'internal scratch']
  %s0 = inlined_call_operand.hbm [shape: f32[8], index: 0, kind: input, shape index: {}]
  %s1 = inlined_call_operand.hbm [shape: f32[2,30720], index: 1, kind: input, shape index: {}]
  %s2 = inlined_call_operand.hbm [shape: f32[2,30720], index: 2, kind: input, shape index: {}]
  %s3 = inlined_call_operand.hbm [shape: f32[1,10240], index: 3, kind: input, shape index: {}]
  %s4 = inlined_call_operand.vmem [shape: f32[2,1], index: 4, kind: output, shape index: {}]
  %s5 = sld [smem:[#allocation0]]
  $region42: #{tpu_custom_call.1} parent=0
    _
  %s7 = ssub.s32 1, %s5
  %s8 = scalar_select 0, %s7, %s5
  $region1: #{tpu_custom_call.1} parent=0
    #allocation2 [shape = 'u8[512]{0}', space=smem, size = 0x200, scoped, tag = 'input window, operand 0, single buffered']
    #allocation3 [shape = 's32[1]{0}', space=sflag, size = 0x4, scoped, tag = 'scoped memory for tpu_custom_call.1']
    #allocation4 [shape = 's32[1]{0}', space=sflag, size = 0x4, scoped, tag = 'scoped memory for tpu_custom_call.1']
    #allocation5 [shape = 'u8[245760]{0}', space=vmem, size = 0x3c000, scoped, tag = 'input window, operand 1, single buffered']
    #allocation6 [shape = 'u8[245760]{0}', space=vmem, size = 0x3c000, scoped, tag = 'input window, operand 2, single buffered']
    #allocation7 [shape = 's32[1]{0}', space=sflag, size = 0x4, scoped, tag = 'scoped memory for tpu_custom_call.1']
    #allocation8 [shape = 'u8[40960]{0}', space=vmem, size = 0xa000, scoped, tag = 'input window, operand 3, single buffered']
    %9 = vsyncpa [#allocation4], 0
    %10 = vsyncpa [#allocation3], 0
    %11 = vsyncpa [#allocation7], 0
    // Predicated region
    $region2: #{tpu_custom_call.1} parent=1 // pred_check
      _
    $region3: #{tpu_custom_call.1} parent=1 // pred_check_branch
      %13 = sbr.rel (0) target = $region5
    $region4: #{tpu_custom_call.1} parent=1 // pred_region
      %s15 = ssub.s32 16, 16
      %16 = vsyncadd [#allocation4], %s15
      %19 = dma.hbm_to_smem %s0, 16, [#allocation2], [#allocation4]
    $region5: #{tpu_custom_call.1} parent=1 // pred_fallthru
      _
    // Predicated region
    $region6: #{tpu_custom_call.1} parent=1 // pred_check
      _
    $region7: #{tpu_custom_call.1} parent=1 // pred_check_branch
      %21 = sbr.rel (0) target = $region9
    $region8: #{tpu_custom_call.1} parent=1 // pred_region
      %s23 = ssub.s32 7680, 7680
      %24 = vsyncadd [#allocation3], %s23
      %s26 = sshll.u32 [#allocation5], 4
      %s27 = int_to_ptr.vmem [resolvable:$true] %s26
      %29 = dma.hbm_to_vmem [thread:$0]  %s1, 7680, %s27, [#allocation3]
    $region9: #{tpu_custom_call.1} parent=1 // pred_fallthru
      _
    // Predicated region
    $region10: #{tpu_custom_call.1} parent=1 // pred_check
      _
    $region11: #{tpu_custom_call.1} parent=1 // pred_check_branch
      %31 = sbr.rel (0) target = $region13
    $region12: #{tpu_custom_call.1} parent=1 // pred_region
      %s33 = ssub.s32 7680, 7680
      %34 = vsyncadd [#allocation7], %s33
      %s36 = sshll.u32 [#allocation6], 4
      %s37 = int_to_ptr.vmem [resolvable:$true] %s36
      %39 = dma.hbm_to_vmem [thread:$0]  %s2, 7680, %s37, [#allocation7]
    $region13: #{tpu_custom_call.1} parent=1 // pred_fallthru
      _
    // Predicated region
    $region14: #{tpu_custom_call.1} parent=1 // pred_check
      _
    $region15: #{tpu_custom_call.1} parent=1 // pred_check_branch
      %41 = sbr.rel (0) target = $region17
    $region16: #{tpu_custom_call.1} parent=1 // pred_region
      %s43 = ssub.s32 1280, 1280
      %44 = vsyncadd [#allocation7], %s43
      %s46 = sshll.u32 [#allocation8], 4
      %s47 = int_to_ptr.vmem [resolvable:$true] %s46
      %49 = dma.hbm_to_vmem [thread:$0]  %s3, 1280, %s47, [#allocation7]
    $region17: #{tpu_custom_call.1} parent=1 // pred_fallthru
      _
    // Predicated region
    $region18: #{tpu_custom_call.1} parent=1 // pred_check
      _
    $region19: #{tpu_custom_call.1} parent=1 // pred_check_branch
      %51 = sbr.rel (0) target = $region21
    $region20: #{tpu_custom_call.1} parent=1 // pred_region
      %52 = dma.done [#allocation4], 16
    $region21: #{tpu_custom_call.1} parent=1 // pred_fallthru
      _
    // Predicated region
    $region22: #{tpu_custom_call.1} parent=1 // pred_check
      _
    $region23: #{tpu_custom_call.1} parent=1 // pred_check_branch
      %54 = sbr.rel (0) target = $region25
    $region24: #{tpu_custom_call.1} parent=1 // pred_region
      %55 = dma.done [#allocation3], 7680
    $region25: #{tpu_custom_call.1} parent=1 // pred_fallthru
      _
    // Predicated region
    $region26: #{tpu_custom_call.1} parent=1 // pred_check
      _
    $region27: #{tpu_custom_call.1} parent=1 // pred_check_branch
      %57 = sbr.rel (0) target = $region29
    $region28: #{tpu_custom_call.1} parent=1 // pred_region
      %58 = dma.done [#allocation7], 7680
    $region29: #{tpu_custom_call.1} parent=1 // pred_fallthru
      _
    // Predicated region
    $region30: #{tpu_custom_call.1} parent=1 // pred_check
      _
    $region31: #{tpu_custom_call.1} parent=1 // pred_check_branch
      %60 = sbr.rel (0) target = $region33
    $region32: #{tpu_custom_call.1} parent=1 // pred_region
      %61 = dma.done [#allocation7], 1280
    $region33: #{tpu_custom_call.1} parent=1 // pred_fallthru
      _
    %62 = sfence
    %s63 = sld [smem:[#allocation2]]
    %s64 = sld [smem:[#allocation2 + $0x1]]
    %s65 = sld [smem:[#allocation2 + $0x2]]
    %s66 = sld [smem:[#allocation2 + $0x3]]
    %s67 = sld [smem:[#allocation2 + $0x4]]
    %s68 = sld [smem:[#allocation2 + $0x5]]
    %s69 = sld [smem:[#allocation2 + $0x6]]
    %s70 = sld [smem:[#allocation2 + $0x7]]
    %v71 = vld [vmem:[#allocation5] sm:$0xff]
    %v72 = vld [vmem:[#allocation5 + $0x8] sm:$0xff]
    %v73 = vstv %s63
    %v74 = vmul.f32 %v73, %v71
    %v75 = vmul.f32 %v73, %v72
    %v76 = vld [vmem:[#allocation5 + $0xa0] sm:$0xff]
    %v77 = vld [vmem:[#allocation5 + $0xa8] sm:$0xff]
    %v78 = vstv %s64
    %v79 = vmul.f32 %v78, %v76
    %v80 = vmul.f32 %v78, %v77
    %v81 = vadd.f32 %v74, %v79
    %v82 = vadd.f32 %v75, %v80
    %v83 = vld [vmem:[#allocation5 + $0x140] sm:$0xff]
    %v84 = vld [vmem:[#allocation5 + $0x148] sm:$0xff]
    %v85 = vstv %s65
    %v86 = vmul.f32 %v85, %v83
    %v87 = vmul.f32 %v85, %v84
    %v88 = vadd.f32 %v81, %v86
    %v89 = vadd.f32 %v82, %v87
    %v90 = vld [vmem:[#allocation6] sm:$0xff]
    %v91 = vld [vmem:[#allocation6 + $0x8] sm:$0xff]
    %v92 = vstv %s66
    %v93 = vmul.f32 %v92, %v90
    %v94 = vmul.f32 %v92, %v91
    %v95 = vadd.f32 %v88, %v93
    %v96 = vadd.f32 %v89, %v94
    %v97 = vld [vmem:[#allocation6 + $0xa0] sm:$0xff]
    %v98 = vld [vmem:[#allocation6 + $0xa8] sm:$0xff]
    %v99 = vstv %s67
    %v100 = vmul.f32 %v99, %v97
    %v101 = vmul.f32 %v99, %v98
    %v102 = vadd.f32 %v95, %v100
    %v103 = vadd.f32 %v96, %v101
    %v104 = vld [vmem:[#allocation6 + $0x140] sm:$0xff]
    %v105 = vld [vmem:[#allocation6 + $0x148] sm:$0xff]
    %v106 = vstv %s68
    %v107 = vmul.f32 %v106, %v104
    %v108 = vmul.f32 %v106, %v105
    %v109 = vadd.f32 %v102, %v107
    %v110 = vadd.f32 %v103, %v108
    %v111 = vstv %s69
    %v112 = vadd.f32 %v109, %v111
    %v113 = vadd.f32 %v110, %v111
    %v114 = vmul.f32 %v112, 0.2
    %v115 = vmul.f32 %v113, 0.2
    %v116 = vmax.f32 %v112, %v114
    %v117 = vmax.f32 %v113, %v115
    %v118 = vld [vmem:[#allocation8] sm:$0xff]
    %v120 = vlaneseq
    %v121 = vshrl.u32 %v120, 7
    %v122 = vsub.s32 0, %v121
    %v123 = vrot.slane %v118, %v122
    %v124 = vlaneseq
    %v125 = vshrl.u32 %v124, 7
    %v126 = vsub.s32 1, %v125
    %v127 = vrot.slane %v118, %v126
    %v128 = vlaneseq
    %v129 = vshrl.u32 %v128, 7
    %v130 = vsub.s32 2, %v129
    %v131 = vrot.slane %v118, %v130
    %v132 = vlaneseq
    %v133 = vshrl.u32 %v132, 7
    %v134 = vsub.s32 3, %v133
    %v135 = vrot.slane %v118, %v134
    %v136 = vlaneseq
    %v137 = vshrl.u32 %v136, 7
    %v138 = vsub.s32 4, %v137
    %v139 = vrot.slane %v118, %v138
    %v140 = vlaneseq
    %v141 = vshrl.u32 %v140, 7
    %v142 = vsub.s32 5, %v141
    %v143 = vrot.slane %v118, %v142
    %v144 = vlaneseq
    %v145 = vshrl.u32 %v144, 7
    %v146 = vsub.s32 6, %v145
    %v147 = vrot.slane %v118, %v146
    %v148 = vlaneseq
    %v149 = vshrl.u32 %v148, 7
    %v150 = vsub.s32 7, %v149
    %v151 = vrot.slane %v118, %v150
    %v152 = vcombine.low %v123, %v127
    %v153 = vcombine.low %v131, %v135
    %v155 = vunpack.c.l.s4 1983009808
    %v156 = vunpack.c.0.s8 %v155
    %v157 = vlaneseq
    %v158 = vshrl.u32 %v157, 7
    %v159 = vsub.s32 %v156, %v158
    %v160 = vrot.slane %v152, %v159
    %v162 = vunpack.c.l.s4 1983009808
    %v163 = vunpack.c.0.s8 %v162
    %v164 = vlaneseq
    %v165 = vshrl.u32 %v164, 7
    %v166 = vsub.s32 %v163, %v165
    %v167 = vrot.slane %v153, %v166
    %v168 = vcombine.low %v160, %v167
    %v169 = vcombine.low %v139, %v143
    %v170 = vcombine.low %v147, %v151
    %v172 = vunpack.c.l.s4 1983009808
    %v173 = vunpack.c.0.s8 %v172
    %v174 = vlaneseq
    %v175 = vshrl.u32 %v174, 7
    %v176 = vsub.s32 %v173, %v175
    %v177 = vrot.slane %v169, %v176
    %v179 = vunpack.c.l.s4 1983009808
    %v180 = vunpack.c.0.s8 %v179
    %v181 = vlaneseq
    %v182 = vshrl.u32 %v181, 7
    %v183 = vsub.s32 %v180, %v182
    %v184 = vrot.slane %v170, %v183
    %v185 = vcombine.low %v177, %v184
    %v188 = vmul.f32 %v116, %v168
    %v189 = vmul.f32 %v117, %v185
    %v190 = vadd.f32 %v188, 0.0
    %v191 = vadd.f32 %v189, 0.0
    %v192 = vld [vmem:[#allocation5 + $0x10] sm:$0xff]
    %v193 = vld [vmem:[#allocation5 + $0x18] sm:$0xff]
    %v194 = vmul.f32 %v73, %v192
    %v195 = vmul.f32 %v73, %v193
    %v196 = vld [vmem:[#allocation5 + $0xb0] sm:$0xff]
    %v197 = vld [vmem:[#allocation5 + $0xb8] sm:$0xff]
    %v198 = vmul.f32 %v78, %v196
    %v199 = vmul.f32 %v78, %v197
    %v200 = vadd.f32 %v194, %v198
    %v201 = vadd.f32 %v195, %v199
    %v202 = vld [vmem:[#allocation5 + $0x150] sm:$0xff]
    %v203 = vld [vmem:[#allocation5 + $0x158] sm:$0xff]
    %v204 = vmul.f32 %v85, %v202
    %v205 = vmul.f32 %v85, %v203
    %v206 = vadd.f32 %v200, %v204
    %v207 = vadd.f32 %v201, %v205
    %v208 = vld [vmem:[#allocation6 + $0x10] sm:$0xff]
    %v209 = vld [vmem:[#allocation6 + $0x18] sm:$0xff]
    %v210 = vmul.f32 %v92, %v208
    %v211 = vmul.f32 %v92, %v209
    %v212 = vadd.f32 %v206, %v210
    %v213 = vadd.f32 %v207, %v211
    %v214 = vld [vmem:[#allocation6 + $0xb0] sm:$0xff]
    %v215 = vld [vmem:[#allocation6 + $0xb8] sm:$0xff]
    %v216 = vmul.f32 %v99, %v214
    %v217 = vmul.f32 %v99, %v215
    %v218 = vadd.f32 %v212, %v216
    %v219 = vadd.f32 %v213, %v217
    %v220 = vld [vmem:[#allocation6 + $0x150] sm:$0xff]
    %v221 = vld [vmem:[#allocation6 + $0x158] sm:$0xff]
    %v222 = vmul.f32 %v106, %v220
    %v223 = vmul.f32 %v106, %v221
    %v224 = vadd.f32 %v218, %v222
    %v225 = vadd.f32 %v219, %v223
    %v226 = vadd.f32 %v224, %v111
    %v227 = vadd.f32 %v225, %v111
    %v228 = vmul.f32 %v226, 0.2
    %v229 = vmul.f32 %v227, 0.2
    %v230 = vmax.f32 %v226, %v228
    %v231 = vmax.f32 %v227, %v229
    %v232 = vld [vmem:[#allocation8 + $0x8] sm:$0xff]
    %v234 = vlaneseq
    %v235 = vshrl.u32 %v234, 7
    %v236 = vsub.s32 0, %v235
    %v237 = vrot.slane %v232, %v236
    %v238 = vlaneseq
    %v239 = vshrl.u32 %v238, 7
    %v240 = vsub.s32 1, %v239
    %v241 = vrot.slane %v232, %v240
    %v242 = vlaneseq
    %v243 = vshrl.u32 %v242, 7
    %v244 = vsub.s32 2, %v243
    %v245 = vrot.slane %v232, %v244
    %v246 = vlaneseq
    %v247 = vshrl.u32 %v246, 7
    %v248 = vsub.s32 3, %v247
    %v249 = vrot.slane %v232, %v248
    %v250 = vlaneseq
    %v251 = vshrl.u32 %v250, 7
    %v252 = vsub.s32 4, %v251
    %v253 = vrot.slane %v232, %v252
    %v254 = vlaneseq
    %v255 = vshrl.u32 %v254, 7
    %v256 = vsub.s32 5, %v255
    %v257 = vrot.slane %v232, %v256
    %v258 = vlaneseq
    %v259 = vshrl.u32 %v258, 7
    %v260 = vsub.s32 6, %v259
    %v261 = vrot.slane %v232, %v260
    %v262 = vlaneseq
    %v263 = vshrl.u32 %v262, 7
    %v264 = vsub.s32 7, %v263
    %v265 = vrot.slane %v232, %v264
    %v266 = vcombine.low %v237, %v241
    %v267 = vcombine.low %v245, %v249
    %v269 = vunpack.c.l.s4 1983009808
    %v270 = vunpack.c.0.s8 %v269
    %v271 = vlaneseq
    %v272 = vshrl.u32 %v271, 7
    %v273 = vsub.s32 %v270, %v272
    %v274 = vrot.slane %v266, %v273
    %v276 = vunpack.c.l.s4 1983009808
    %v277 = vunpack.c.0.s8 %v276
    %v278 = vlaneseq
    %v279 = vshrl.u32 %v278, 7
    %v280 = vsub.s32 %v277, %v279
    %v281 = vrot.slane %v267, %v280
    %v282 = vcombine.low %v274, %v281
    %v283 = vcombine.low %v253, %v257
    %v284 = vcombine.low %v261, %v265
    %v286 = vunpack.c.l.s4 1983009808
    %v287 = vunpack.c.0.s8 %v286
    %v288 = vlaneseq
    %v289 = vshrl.u32 %v288, 7
    %v290 = vsub.s32 %v287, %v289
    %v291 = vrot.slane %v283, %v290
    %v293 = vunpack.c.l.s4 1983009808
    %v294 = vunpack.c.0.s8 %v293
    %v295 = vlaneseq
    %v296 = vshrl.u32 %v295, 7
    %v297 = vsub.s32 %v294, %v296
    %v298 = vrot.slane %v284, %v297
    %v299 = vcombine.low %v291, %v298
    %v302 = vmul.f32 %v230, %v282
    %v303 = vmul.f32 %v231, %v299
    %v304 = vadd.f32 %v190, %v302
    %v305 = vadd.f32 %v191, %v303
    %v306 = vld [vmem:[#allocation5 + $0x20] sm:$0xff]
    %v307 = vld [vmem:[#allocation5 + $0x28] sm:$0xff]
    %v308 = vmul.f32 %v73, %v306
    %v309 = vmul.f32 %v73, %v307
    %v310 = vld [vmem:[#allocation5 + $0xc0] sm:$0xff]
    %v311 = vld [vmem:[#allocation5 + $0xc8] sm:$0xff]
    %v312 = vmul.f32 %v78, %v310
    %v313 = vmul.f32 %v78, %v311
    %v314 = vadd.f32 %v308, %v312
    %v315 = vadd.f32 %v309, %v313
    %v316 = vld [vmem:[#allocation5 + $0x160] sm:$0xff]
    %v317 = vld [vmem:[#allocation5 + $0x168] sm:$0xff]
    %v318 = vmul.f32 %v85, %v316
    %v319 = vmul.f32 %v85, %v317
    %v320 = vadd.f32 %v314, %v318
    %v321 = vadd.f32 %v315, %v319
    %v322 = vld [vmem:[#allocation6 + $0x20] sm:$0xff]
    %v323 = vld [vmem:[#allocation6 + $0x28] sm:$0xff]
    %v324 = vmul.f32 %v92, %v322
    %v325 = vmul.f32 %v92, %v323
    %v326 = vadd.f32 %v320, %v324
    %v327 = vadd.f32 %v321, %v325
    %v328 = vld [vmem:[#allocation6 + $0xc0] sm:$0xff]
    %v329 = vld [vmem:[#allocation6 + $0xc8] sm:$0xff]
    %v330 = vmul.f32 %v99, %v328
    %v331 = vmul.f32 %v99, %v329
    %v332 = vadd.f32 %v326, %v330
    %v333 = vadd.f32 %v327, %v331
    %v334 = vld [vmem:[#allocation6 + $0x160] sm:$0xff]
    %v335 = vld [vmem:[#allocation6 + $0x168] sm:$0xff]
    %v336 = vmul.f32 %v106, %v334
    %v337 = vmul.f32 %v106, %v335
    %v338 = vadd.f32 %v332, %v336
    %v339 = vadd.f32 %v333, %v337
    %v340 = vadd.f32 %v338, %v111
    %v341 = vadd.f32 %v339, %v111
    %v342 = vmul.f32 %v340, 0.2
    %v343 = vmul.f32 %v341, 0.2
    %v344 = vmax.f32 %v340, %v342
    %v345 = vmax.f32 %v341, %v343
    %v346 = vld [vmem:[#allocation8 + $0x10] sm:$0xff]
    %v348 = vlaneseq
    %v349 = vshrl.u32 %v348, 7
    %v350 = vsub.s32 0, %v349
    %v351 = vrot.slane %v346, %v350
    %v352 = vlaneseq
    %v353 = vshrl.u32 %v352, 7
    %v354 = vsub.s32 1, %v353
    %v355 = vrot.slane %v346, %v354
    %v356 = vlaneseq
    %v357 = vshrl.u32 %v356, 7
    %v358 = vsub.s32 2, %v357
    %v359 = vrot.slane %v346, %v358
    %v360 = vlaneseq
    %v361 = vshrl.u32 %v360, 7
    %v362 = vsub.s32 3, %v361
    %v363 = vrot.slane %v346, %v362
    %v364 = vlaneseq
    %v365 = vshrl.u32 %v364, 7
    %v366 = vsub.s32 4, %v365
    %v367 = vrot.slane %v346, %v366
    %v368 = vlaneseq
    %v369 = vshrl.u32 %v368, 7
    %v370 = vsub.s32 5, %v369
    %v371 = vrot.slane %v346, %v370
    %v372 = vlaneseq
    %v373 = vshrl.u32 %v372, 7
    %v374 = vsub.s32 6, %v373
    %v375 = vrot.slane %v346, %v374
    %v376 = vlaneseq
    %v377 = vshrl.u32 %v376, 7
    %v378 = vsub.s32 7, %v377
    %v379 = vrot.slane %v346, %v378
    %v380 = vcombine.low %v351, %v355
    %v381 = vcombine.low %v359, %v363
    %v383 = vunpack.c.l.s4 1983009808
    %v384 = vunpack.c.0.s8 %v383
    %v385 = vlaneseq
    %v386 = vshrl.u32 %v385, 7
    %v387 = vsub.s32 %v384, %v386
    %v388 = vrot.slane %v380, %v387
    %v390 = vunpack.c.l.s4 1983009808
    %v391 = vunpack.c.0.s8 %v390
    %v392 = vlaneseq
    %v393 = vshrl.u32 %v392, 7
    %v394 = vsub.s32 %v391, %v393
    %v395 = vrot.slane %v381, %v394
    %v396 = vcombine.low %v388, %v395
    %v397 = vcombine.low %v367, %v371
    %v398 = vcombine.low %v375, %v379
    %v400 = vunpack.c.l.s4 1983009808
    %v401 = vunpack.c.0.s8 %v400
    %v402 = vlaneseq
    %v403 = vshrl.u32 %v402, 7
    %v404 = vsub.s32 %v401, %v403
    %v405 = vrot.slane %v397, %v404
    %v407 = vunpack.c.l.s4 1983009808
    %v408 = vunpack.c.0.s8 %v407
    %v409 = vlaneseq
    %v410 = vshrl.u32 %v409, 7
    %v411 = vsub.s32 %v408, %v410
    %v412 = vrot.slane %v398, %v411
    %v413 = vcombine.low %v405, %v412
    %v416 = vmul.f32 %v344, %v396
    %v417 = vmul.f32 %v345, %v413
    %v418 = vadd.f32 %v304, %v416
    %v419 = vadd.f32 %v305, %v417
    %v420 = vld [vmem:[#allocation5 + $0x30] sm:$0xff]
    %v421 = vld [vmem:[#allocation5 + $0x38] sm:$0xff]
    %v422 = vmul.f32 %v73, %v420
    %v423 = vmul.f32 %v73, %v421
    %v424 = vld [vmem:[#allocation5 + $0xd0] sm:$0xff]
    %v425 = vld [vmem:[#allocation5 + $0xd8] sm:$0xff]
    %v426 = vmul.f32 %v78, %v424
    %v427 = vmul.f32 %v78, %v425
    %v428 = vadd.f32 %v422, %v426
    %v429 = vadd.f32 %v423, %v427
    %v430 = vld [vmem:[#allocation5 + $0x170] sm:$0xff]
    %v431 = vld [vmem:[#allocation5 + $0x178] sm:$0xff]
    %v432 = vmul.f32 %v85, %v430
    %v433 = vmul.f32 %v85, %v431
    %v434 = vadd.f32 %v428, %v432
    %v435 = vadd.f32 %v429, %v433
    %v436 = vld [vmem:[#allocation6 + $0x30] sm:$0xff]
    %v437 = vld [vmem:[#allocation6 + $0x38] sm:$0xff]
    %v438 = vmul.f32 %v92, %v436
    %v439 = vmul.f32 %v92, %v437
    %v440 = vadd.f32 %v434, %v438
    %v441 = vadd.f32 %v435, %v439
    %v442 = vld [vmem:[#allocation6 + $0xd0] sm:$0xff]
    %v443 = vld [vmem:[#allocation6 + $0xd8] sm:$0xff]
    %v444 = vmul.f32 %v99, %v442
    %v445 = vmul.f32 %v99, %v443
    %v446 = vadd.f32 %v440, %v444
    %v447 = vadd.f32 %v441, %v445
    %v448 = vld [vmem:[#allocation6 + $0x170] sm:$0xff]
    %v449 = vld [vmem:[#allocation6 + $0x178] sm:$0xff]
    %v450 = vmul.f32 %v106, %v448
    %v451 = vmul.f32 %v106, %v449
    %v452 = vadd.f32 %v446, %v450
    %v453 = vadd.f32 %v447, %v451
    %v454 = vadd.f32 %v452, %v111
    %v455 = vadd.f32 %v453, %v111
    %v456 = vmul.f32 %v454, 0.2
    %v457 = vmul.f32 %v455, 0.2
    %v458 = vmax.f32 %v454, %v456
    %v459 = vmax.f32 %v455, %v457
    %v460 = vld [vmem:[#allocation8 + $0x18] sm:$0xff]
    %v462 = vlaneseq
    %v463 = vshrl.u32 %v462, 7
    %v464 = vsub.s32 0, %v463
    %v465 = vrot.slane %v460, %v464
    %v466 = vlaneseq
    %v467 = vshrl.u32 %v466, 7
    %v468 = vsub.s32 1, %v467
    %v469 = vrot.slane %v460, %v468
    %v470 = vlaneseq
    %v471 = vshrl.u32 %v470, 7
    %v472 = vsub.s32 2, %v471
    %v473 = vrot.slane %v460, %v472
    %v474 = vlaneseq
    %v475 = vshrl.u32 %v474, 7
    %v476 = vsub.s32 3, %v475
    %v477 = vrot.slane %v460, %v476
    %v478 = vlaneseq
    %v479 = vshrl.u32 %v478, 7
    %v480 = vsub.s32 4, %v479
    %v481 = vrot.slane %v460, %v480
    %v482 = vlaneseq
    %v483 = vshrl.u32 %v482, 7
    %v484 = vsub.s32 5, %v483
    %v485 = vrot.slane %v460, %v484
    %v486 = vlaneseq
    %v487 = vshrl.u32 %v486, 7
    %v488 = vsub.s32 6, %v487
    %v489 = vrot.slane %v460, %v488
    %v490 = vlaneseq
    %v491 = vshrl.u32 %v490, 7
    %v492 = vsub.s32 7, %v491
    %v493 = vrot.slane %v460, %v492
    %v494 = vcombine.low %v465, %v469
    %v495 = vcombine.low %v473, %v477
    %v497 = vunpack.c.l.s4 1983009808
    %v498 = vunpack.c.0.s8 %v497
    %v499 = vlaneseq
    %v500 = vshrl.u32 %v499, 7
    %v501 = vsub.s32 %v498, %v500
    %v502 = vrot.slane %v494, %v501
    %v504 = vunpack.c.l.s4 1983009808
    %v505 = vunpack.c.0.s8 %v504
    %v506 = vlaneseq
    %v507 = vshrl.u32 %v506, 7
    %v508 = vsub.s32 %v505, %v507
    %v509 = vrot.slane %v495, %v508
    %v510 = vcombine.low %v502, %v509
    %v511 = vcombine.low %v481, %v485
    %v512 = vcombine.low %v489, %v493
    %v514 = vunpack.c.l.s4 1983009808
    %v515 = vunpack.c.0.s8 %v514
    %v516 = vlaneseq
    %v517 = vshrl.u32 %v516, 7
    %v518 = vsub.s32 %v515, %v517
    %v519 = vrot.slane %v511, %v518
    %v521 = vunpack.c.l.s4 1983009808
    %v522 = vunpack.c.0.s8 %v521
    %v523 = vlaneseq
    %v524 = vshrl.u32 %v523, 7
    %v525 = vsub.s32 %v522, %v524
    %v526 = vrot.slane %v512, %v525
    %v527 = vcombine.low %v519, %v526
    %v530 = vmul.f32 %v458, %v510
    %v531 = vmul.f32 %v459, %v527
    %v532 = vadd.f32 %v418, %v530
    %v533 = vadd.f32 %v419, %v531
    %v534 = vld [vmem:[#allocation5 + $0x40] sm:$0xff]
    %v535 = vld [vmem:[#allocation5 + $0x48] sm:$0xff]
    %v536 = vmul.f32 %v73, %v534
    %v537 = vmul.f32 %v73, %v535
    %v538 = vld [vmem:[#allocation5 + $0xe0] sm:$0xff]
    %v539 = vld [vmem:[#allocation5 + $0xe8] sm:$0xff]
    %v540 = vmul.f32 %v78, %v538
    %v541 = vmul.f32 %v78, %v539
    %v542 = vadd.f32 %v536, %v540
    %v543 = vadd.f32 %v537, %v541
    %v544 = vld [vmem:[#allocation5 + $0x180] sm:$0xff]
    %v545 = vld [vmem:[#allocation5 + $0x188] sm:$0xff]
    %v546 = vmul.f32 %v85, %v544
    %v547 = vmul.f32 %v85, %v545
    %v548 = vadd.f32 %v542, %v546
    %v549 = vadd.f32 %v543, %v547
    %v550 = vld [vmem:[#allocation6 + $0x40] sm:$0xff]
    %v551 = vld [vmem:[#allocation6 + $0x48] sm:$0xff]
    %v552 = vmul.f32 %v92, %v550
    %v553 = vmul.f32 %v92, %v551
    %v554 = vadd.f32 %v548, %v552
    %v555 = vadd.f32 %v549, %v553
    %v556 = vld [vmem:[#allocation6 + $0xe0] sm:$0xff]
    %v557 = vld [vmem:[#allocation6 + $0xe8] sm:$0xff]
    %v558 = vmul.f32 %v99, %v556
    %v559 = vmul.f32 %v99, %v557
    %v560 = vadd.f32 %v554, %v558
    %v561 = vadd.f32 %v555, %v559
    %v562 = vld [vmem:[#allocation6 + $0x180] sm:$0xff]
    %v563 = vld [vmem:[#allocation6 + $0x188] sm:$0xff]
    %v564 = vmul.f32 %v106, %v562
    %v565 = vmul.f32 %v106, %v563
    %v566 = vadd.f32 %v560, %v564
    %v567 = vadd.f32 %v561, %v565
    %v568 = vadd.f32 %v566, %v111
    %v569 = vadd.f32 %v567, %v111
    %v570 = vmul.f32 %v568, 0.2
    %v571 = vmul.f32 %v569, 0.2
    %v572 = vmax.f32 %v568, %v570
    %v573 = vmax.f32 %v569, %v571
    %v574 = vld [vmem:[#allocation8 + $0x20] sm:$0xff]
    %v576 = vlaneseq
    %v577 = vshrl.u32 %v576, 7
    %v578 = vsub.s32 0, %v577
    %v579 = vrot.slane %v574, %v578
    %v580 = vlaneseq
    %v581 = vshrl.u32 %v580, 7
    %v582 = vsub.s32 1, %v581
    %v583 = vrot.slane %v574, %v582
    %v584 = vlaneseq
    %v585 = vshrl.u32 %v584, 7
    %v586 = vsub.s32 2, %v585
    %v587 = vrot.slane %v574, %v586
    %v588 = vlaneseq
    %v589 = vshrl.u32 %v588, 7
    %v590 = vsub.s32 3, %v589
    %v591 = vrot.slane %v574, %v590
    %v592 = vlaneseq
    %v593 = vshrl.u32 %v592, 7
    %v594 = vsub.s32 4, %v593
    %v595 = vrot.slane %v574, %v594
    %v596 = vlaneseq
    %v597 = vshrl.u32 %v596, 7
    %v598 = vsub.s32 5, %v597
    %v599 = vrot.slane %v574, %v598
    %v600 = vlaneseq
    %v601 = vshrl.u32 %v600, 7
    %v602 = vsub.s32 6, %v601
    %v603 = vrot.slane %v574, %v602
    %v604 = vlaneseq
    %v605 = vshrl.u32 %v604, 7
    %v606 = vsub.s32 7, %v605
    %v607 = vrot.slane %v574, %v606
    %v608 = vcombine.low %v579, %v583
    %v609 = vcombine.low %v587, %v591
    %v611 = vunpack.c.l.s4 1983009808
    %v612 = vunpack.c.0.s8 %v611
    %v613 = vlaneseq
    %v614 = vshrl.u32 %v613, 7
    %v615 = vsub.s32 %v612, %v614
    %v616 = vrot.slane %v608, %v615
    %v618 = vunpack.c.l.s4 1983009808
    %v619 = vunpack.c.0.s8 %v618
    %v620 = vlaneseq
    %v621 = vshrl.u32 %v620, 7
    %v622 = vsub.s32 %v619, %v621
    %v623 = vrot.slane %v609, %v622
    %v624 = vcombine.low %v616, %v623
    %v625 = vcombine.low %v595, %v599
    %v626 = vcombine.low %v603, %v607
    %v628 = vunpack.c.l.s4 1983009808
    %v629 = vunpack.c.0.s8 %v628
    %v630 = vlaneseq
    %v631 = vshrl.u32 %v630, 7
    %v632 = vsub.s32 %v629, %v631
    %v633 = vrot.slane %v625, %v632
    %v635 = vunpack.c.l.s4 1983009808
    %v636 = vunpack.c.0.s8 %v635
    %v637 = vlaneseq
    %v638 = vshrl.u32 %v637, 7
    %v639 = vsub.s32 %v636, %v638
    %v640 = vrot.slane %v626, %v639
    %v641 = vcombine.low %v633, %v640
    %v644 = vmul.f32 %v572, %v624
    %v645 = vmul.f32 %v573, %v641
    %v646 = vadd.f32 %v532, %v644
    %v647 = vadd.f32 %v533, %v645
    %v648 = vld [vmem:[#allocation5 + $0x50] sm:$0xff]
    %v649 = vld [vmem:[#allocation5 + $0x58] sm:$0xff]
    %v650 = vmul.f32 %v73, %v648
    %v651 = vmul.f32 %v73, %v649
    %v652 = vld [vmem:[#allocation5 + $0xf0] sm:$0xff]
    %v653 = vld [vmem:[#allocation5 + $0xf8] sm:$0xff]
    %v654 = vmul.f32 %v78, %v652
    %v655 = vmul.f32 %v78, %v653
    %v656 = vadd.f32 %v650, %v654
    %v657 = vadd.f32 %v651, %v655
    %v658 = vld [vmem:[#allocation5 + $0x190] sm:$0xff]
    %v659 = vld [vmem:[#allocation5 + $0x198] sm:$0xff]
    %v660 = vmul.f32 %v85, %v658
    %v661 = vmul.f32 %v85, %v659
    %v662 = vadd.f32 %v656, %v660
    %v663 = vadd.f32 %v657, %v661
    %v664 = vld [vmem:[#allocation6 + $0x50] sm:$0xff]
    %v665 = vld [vmem:[#allocation6 + $0x58] sm:$0xff]
    %v666 = vmul.f32 %v92, %v664
    %v667 = vmul.f32 %v92, %v665
    %v668 = vadd.f32 %v662, %v666
    %v669 = vadd.f32 %v663, %v667
    %v670 = vld [vmem:[#allocation6 + $0xf0] sm:$0xff]
    %v671 = vld [vmem:[#allocation6 + $0xf8] sm:$0xff]
    %v672 = vmul.f32 %v99, %v670
    %v673 = vmul.f32 %v99, %v671
    %v674 = vadd.f32 %v668, %v672
    %v675 = vadd.f32 %v669, %v673
    %v676 = vld [vmem:[#allocation6 + $0x190] sm:$0xff]
    %v677 = vld [vmem:[#allocation6 + $0x198] sm:$0xff]
    %v678 = vmul.f32 %v106, %v676
    %v679 = vmul.f32 %v106, %v677
    %v680 = vadd.f32 %v674, %v678
    %v681 = vadd.f32 %v675, %v679
    %v682 = vadd.f32 %v680, %v111
    %v683 = vadd.f32 %v681, %v111
    %v684 = vmul.f32 %v682, 0.2
    %v685 = vmul.f32 %v683, 0.2
    %v686 = vmax.f32 %v682, %v684
    %v687 = vmax.f32 %v683, %v685
    %v688 = vld [vmem:[#allocation8 + $0x28] sm:$0xff]
    %v690 = vlaneseq
    %v691 = vshrl.u32 %v690, 7
    %v692 = vsub.s32 0, %v691
    %v693 = vrot.slane %v688, %v692
    %v694 = vlaneseq
    %v695 = vshrl.u32 %v694, 7
    %v696 = vsub.s32 1, %v695
    %v697 = vrot.slane %v688, %v696
    %v698 = vlaneseq
    %v699 = vshrl.u32 %v698, 7
    %v700 = vsub.s32 2, %v699
    %v701 = vrot.slane %v688, %v700
    %v702 = vlaneseq
    %v703 = vshrl.u32 %v702, 7
    %v704 = vsub.s32 3, %v703
    %v705 = vrot.slane %v688, %v704
    %v706 = vlaneseq
    %v707 = vshrl.u32 %v706, 7
    %v708 = vsub.s32 4, %v707
    %v709 = vrot.slane %v688, %v708
    %v710 = vlaneseq
    %v711 = vshrl.u32 %v710, 7
    %v712 = vsub.s32 5, %v711
    %v713 = vrot.slane %v688, %v712
    %v714 = vlaneseq
    %v715 = vshrl.u32 %v714, 7
    %v716 = vsub.s32 6, %v715
    %v717 = vrot.slane %v688, %v716
    %v718 = vlaneseq
    %v719 = vshrl.u32 %v718, 7
    %v720 = vsub.s32 7, %v719
    %v721 = vrot.slane %v688, %v720
    %v722 = vcombine.low %v693, %v697
    %v723 = vcombine.low %v701, %v705
    %v725 = vunpack.c.l.s4 1983009808
    %v726 = vunpack.c.0.s8 %v725
    %v727 = vlaneseq
    %v728 = vshrl.u32 %v727, 7
    %v729 = vsub.s32 %v726, %v728
    %v730 = vrot.slane %v722, %v729
    %v732 = vunpack.c.l.s4 1983009808
    %v733 = vunpack.c.0.s8 %v732
    %v734 = vlaneseq
    %v735 = vshrl.u32 %v734, 7
    %v736 = vsub.s32 %v733, %v735
    %v737 = vrot.slane %v723, %v736
    %v738 = vcombine.low %v730, %v737
    %v739 = vcombine.low %v709, %v713
    %v740 = vcombine.low %v717, %v721
    %v742 = vunpack.c.l.s4 1983009808
    %v743 = vunpack.c.0.s8 %v742
    %v744 = vlaneseq
    %v745 = vshrl.u32 %v744, 7
    %v746 = vsub.s32 %v743, %v745
    %v747 = vrot.slane %v739, %v746
    %v749 = vunpack.c.l.s4 1983009808
    %v750 = vunpack.c.0.s8 %v749
    %v751 = vlaneseq
    %v752 = vshrl.u32 %v751, 7
    %v753 = vsub.s32 %v750, %v752
    %v754 = vrot.slane %v740, %v753
    %v755 = vcombine.low %v747, %v754
    %v758 = vmul.f32 %v686, %v738
    %v759 = vmul.f32 %v687, %v755
    %v760 = vadd.f32 %v646, %v758
    %v761 = vadd.f32 %v647, %v759
    %v762 = vld [vmem:[#allocation5 + $0x60] sm:$0xff]
    %v763 = vld [vmem:[#allocation5 + $0x68] sm:$0xff]
    %v764 = vmul.f32 %v73, %v762
    %v765 = vmul.f32 %v73, %v763
    %v766 = vld [vmem:[#allocation5 + $0x100] sm:$0xff]
    %v767 = vld [vmem:[#allocation5 + $0x108] sm:$0xff]
    %v768 = vmul.f32 %v78, %v766
    %v769 = vmul.f32 %v78, %v767
    %v770 = vadd.f32 %v764, %v768
    %v771 = vadd.f32 %v765, %v769
    %v772 = vld [vmem:[#allocation5 + $0x1a0] sm:$0xff]
    %v773 = vld [vmem:[#allocation5 + $0x1a8] sm:$0xff]
    %v774 = vmul.f32 %v85, %v772
    %v775 = vmul.f32 %v85, %v773
    %v776 = vadd.f32 %v770, %v774
    %v777 = vadd.f32 %v771, %v775
    %v778 = vld [vmem:[#allocation6 + $0x60] sm:$0xff]
    %v779 = vld [vmem:[#allocation6 + $0x68] sm:$0xff]
    %v780 = vmul.f32 %v92, %v778
    %v781 = vmul.f32 %v92, %v779
    %v782 = vadd.f32 %v776, %v780
    %v783 = vadd.f32 %v777, %v781
    %v784 = vld [vmem:[#allocation6 + $0x100] sm:$0xff]
    %v785 = vld [vmem:[#allocation6 + $0x108] sm:$0xff]
    %v786 = vmul.f32 %v99, %v784
    %v787 = vmul.f32 %v99, %v785
    %v788 = vadd.f32 %v782, %v786
    %v789 = vadd.f32 %v783, %v787
    %v790 = vld [vmem:[#allocation6 + $0x1a0] sm:$0xff]
    %v791 = vld [vmem:[#allocation6 + $0x1a8] sm:$0xff]
    %v792 = vmul.f32 %v106, %v790
    %v793 = vmul.f32 %v106, %v791
    %v794 = vadd.f32 %v788, %v792
    %v795 = vadd.f32 %v789, %v793
    %v796 = vadd.f32 %v794, %v111
    %v797 = vadd.f32 %v795, %v111
    %v798 = vmul.f32 %v796, 0.2
    %v799 = vmul.f32 %v797, 0.2
    %v800 = vmax.f32 %v796, %v798
    %v801 = vmax.f32 %v797, %v799
    %v802 = vld [vmem:[#allocation8 + $0x30] sm:$0xff]
    %v804 = vlaneseq
    %v805 = vshrl.u32 %v804, 7
    %v806 = vsub.s32 0, %v805
    %v807 = vrot.slane %v802, %v806
    %v808 = vlaneseq
    %v809 = vshrl.u32 %v808, 7
    %v810 = vsub.s32 1, %v809
    %v811 = vrot.slane %v802, %v810
    %v812 = vlaneseq
    %v813 = vshrl.u32 %v812, 7
    %v814 = vsub.s32 2, %v813
    %v815 = vrot.slane %v802, %v814
    %v816 = vlaneseq
    %v817 = vshrl.u32 %v816, 7
    %v818 = vsub.s32 3, %v817
    %v819 = vrot.slane %v802, %v818
    %v820 = vlaneseq
    %v821 = vshrl.u32 %v820, 7
    %v822 = vsub.s32 4, %v821
    %v823 = vrot.slane %v802, %v822
    %v824 = vlaneseq
    %v825 = vshrl.u32 %v824, 7
    %v826 = vsub.s32 5, %v825
    %v827 = vrot.slane %v802, %v826
    %v828 = vlaneseq
    %v829 = vshrl.u32 %v828, 7
    %v830 = vsub.s32 6, %v829
    %v831 = vrot.slane %v802, %v830
    %v832 = vlaneseq
    %v833 = vshrl.u32 %v832, 7
    %v834 = vsub.s32 7, %v833
    %v835 = vrot.slane %v802, %v834
    %v836 = vcombine.low %v807, %v811
    %v837 = vcombine.low %v815, %v819
    %v839 = vunpack.c.l.s4 1983009808
    %v840 = vunpack.c.0.s8 %v839
    %v841 = vlaneseq
    %v842 = vshrl.u32 %v841, 7
    %v843 = vsub.s32 %v840, %v842
    %v844 = vrot.slane %v836, %v843
    %v846 = vunpack.c.l.s4 1983009808
    %v847 = vunpack.c.0.s8 %v846
    %v848 = vlaneseq
    %v849 = vshrl.u32 %v848, 7
    %v850 = vsub.s32 %v847, %v849
    %v851 = vrot.slane %v837, %v850
    %v852 = vcombine.low %v844, %v851
    %v853 = vcombine.low %v823, %v827
    %v854 = vcombine.low %v831, %v835
    %v856 = vunpack.c.l.s4 1983009808
    %v857 = vunpack.c.0.s8 %v856
    %v858 = vlaneseq
    %v859 = vshrl.u32 %v858, 7
    %v860 = vsub.s32 %v857, %v859
    %v861 = vrot.slane %v853, %v860
    %v863 = vunpack.c.l.s4 1983009808
    %v864 = vunpack.c.0.s8 %v863
    %v865 = vlaneseq
    %v866 = vshrl.u32 %v865, 7
    %v867 = vsub.s32 %v864, %v866
    %v868 = vrot.slane %v854, %v867
    %v869 = vcombine.low %v861, %v868
    %v872 = vmul.f32 %v800, %v852
    %v873 = vmul.f32 %v801, %v869
    %v874 = vadd.f32 %v760, %v872
    %v875 = vadd.f32 %v761, %v873
    %v876 = vld [vmem:[#allocation5 + $0x70] sm:$0xff]
    %v877 = vld [vmem:[#allocation5 + $0x78] sm:$0xff]
    %v878 = vmul.f32 %v73, %v876
    %v879 = vmul.f32 %v73, %v877
    %v880 = vld [vmem:[#allocation5 + $0x110] sm:$0xff]
    %v881 = vld [vmem:[#allocation5 + $0x118] sm:$0xff]
    %v882 = vmul.f32 %v78, %v880
    %v883 = vmul.f32 %v78, %v881
    %v884 = vadd.f32 %v878, %v882
    %v885 = vadd.f32 %v879, %v883
    %v886 = vld [vmem:[#allocation5 + $0x1b0] sm:$0xff]
    %v887 = vld [vmem:[#allocation5 + $0x1b8] sm:$0xff]
    %v888 = vmul.f32 %v85, %v886
    %v889 = vmul.f32 %v85, %v887
    %v890 = vadd.f32 %v884, %v888
    %v891 = vadd.f32 %v885, %v889
    %v892 = vld [vmem:[#allocation6 + $0x70] sm:$0xff]
    %v893 = vld [vmem:[#allocation6 + $0x78] sm:$0xff]
    %v894 = vmul.f32 %v92, %v892
    %v895 = vmul.f32 %v92, %v893
    %v896 = vadd.f32 %v890, %v894
    %v897 = vadd.f32 %v891, %v895
    %v898 = vld [vmem:[#allocation6 + $0x110] sm:$0xff]
    %v899 = vld [vmem:[#allocation6 + $0x118] sm:$0xff]
    %v900 = vmul.f32 %v99, %v898
    %v901 = vmul.f32 %v99, %v899
    %v902 = vadd.f32 %v896, %v900
    %v903 = vadd.f32 %v897, %v901
    %v904 = vld [vmem:[#allocation6 + $0x1b0] sm:$0xff]
    %v905 = vld [vmem:[#allocation6 + $0x1b8] sm:$0xff]
    %v906 = vmul.f32 %v106, %v904
    %v907 = vmul.f32 %v106, %v905
    %v908 = vadd.f32 %v902, %v906
    %v909 = vadd.f32 %v903, %v907
    %v910 = vadd.f32 %v908, %v111
    %v911 = vadd.f32 %v909, %v111
    %v912 = vmul.f32 %v910, 0.2
    %v913 = vmul.f32 %v911, 0.2
    %v914 = vmax.f32 %v910, %v912
    %v915 = vmax.f32 %v911, %v913
    %v916 = vld [vmem:[#allocation8 + $0x38] sm:$0xff]
    %v918 = vlaneseq
    %v919 = vshrl.u32 %v918, 7
    %v920 = vsub.s32 0, %v919
    %v921 = vrot.slane %v916, %v920
    %v922 = vlaneseq
    %v923 = vshrl.u32 %v922, 7
    %v924 = vsub.s32 1, %v923
    %v925 = vrot.slane %v916, %v924
    %v926 = vlaneseq
    %v927 = vshrl.u32 %v926, 7
    %v928 = vsub.s32 2, %v927
    %v929 = vrot.slane %v916, %v928
    %v930 = vlaneseq
    %v931 = vshrl.u32 %v930, 7
    %v932 = vsub.s32 3, %v931
    %v933 = vrot.slane %v916, %v932
    %v934 = vlaneseq
    %v935 = vshrl.u32 %v934, 7
    %v936 = vsub.s32 4, %v935
    %v937 = vrot.slane %v916, %v936
    %v938 = vlaneseq
    %v939 = vshrl.u32 %v938, 7
    %v940 = vsub.s32 5, %v939
    %v941 = vrot.slane %v916, %v940
    %v942 = vlaneseq
    %v943 = vshrl.u32 %v942, 7
    %v944 = vsub.s32 6, %v943
    %v945 = vrot.slane %v916, %v944
    %v946 = vlaneseq
    %v947 = vshrl.u32 %v946, 7
    %v948 = vsub.s32 7, %v947
    %v949 = vrot.slane %v916, %v948
    %v950 = vcombine.low %v921, %v925
    %v951 = vcombine.low %v929, %v933
    %v953 = vunpack.c.l.s4 1983009808
    %v954 = vunpack.c.0.s8 %v953
    %v955 = vlaneseq
    %v956 = vshrl.u32 %v955, 7
    %v957 = vsub.s32 %v954, %v956
    %v958 = vrot.slane %v950, %v957
    %v960 = vunpack.c.l.s4 1983009808
    %v961 = vunpack.c.0.s8 %v960
    %v962 = vlaneseq
    %v963 = vshrl.u32 %v962, 7
    %v964 = vsub.s32 %v961, %v963
    %v965 = vrot.slane %v951, %v964
    %v966 = vcombine.low %v958, %v965
    %v967 = vcombine.low %v937, %v941
    %v968 = vcombine.low %v945, %v949
    %v970 = vunpack.c.l.s4 1983009808
    %v971 = vunpack.c.0.s8 %v970
    %v972 = vlaneseq
    %v973 = vshrl.u32 %v972, 7
    %v974 = vsub.s32 %v971, %v973
    %v975 = vrot.slane %v967, %v974
    %v977 = vunpack.c.l.s4 1983009808
    %v978 = vunpack.c.0.s8 %v977
    %v979 = vlaneseq
    %v980 = vshrl.u32 %v979, 7
    %v981 = vsub.s32 %v978, %v980
    %v982 = vrot.slane %v968, %v981
    %v983 = vcombine.low %v975, %v982
    %v986 = vmul.f32 %v914, %v966
    %v987 = vmul.f32 %v915, %v983
    %v988 = vadd.f32 %v874, %v986
    %v989 = vadd.f32 %v875, %v987
    %v990 = vld [vmem:[#allocation5 + $0x80] sm:$0xff]
    %v991 = vld [vmem:[#allocation5 + $0x88] sm:$0xff]
    %v992 = vmul.f32 %v73, %v990
    %v993 = vmul.f32 %v73, %v991
    %v994 = vld [vmem:[#allocation5 + $0x120] sm:$0xff]
    %v995 = vld [vmem:[#allocation5 + $0x128] sm:$0xff]
    %v996 = vmul.f32 %v78, %v994
    %v997 = vmul.f32 %v78, %v995
    %v998 = vadd.f32 %v992, %v996
    %v999 = vadd.f32 %v993, %v997
    %v1000 = vld [vmem:[#allocation5 + $0x1c0] sm:$0xff]
    %v1001 = vld [vmem:[#allocation5 + $0x1c8] sm:$0xff]
    %v1002 = vmul.f32 %v85, %v1000
    %v1003 = vmul.f32 %v85, %v1001
    %v1004 = vadd.f32 %v998, %v1002
    %v1005 = vadd.f32 %v999, %v1003
    %v1006 = vld [vmem:[#allocation6 + $0x80] sm:$0xff]
    %v1007 = vld [vmem:[#allocation6 + $0x88] sm:$0xff]
    %v1008 = vmul.f32 %v92, %v1006
    %v1009 = vmul.f32 %v92, %v1007
    %v1010 = vadd.f32 %v1004, %v1008
    %v1011 = vadd.f32 %v1005, %v1009
    %v1012 = vld [vmem:[#allocation6 + $0x120] sm:$0xff]
    %v1013 = vld [vmem:[#allocation6 + $0x128] sm:$0xff]
    %v1014 = vmul.f32 %v99, %v1012
    %v1015 = vmul.f32 %v99, %v1013
    %v1016 = vadd.f32 %v1010, %v1014
    %v1017 = vadd.f32 %v1011, %v1015
    %v1018 = vld [vmem:[#allocation6 + $0x1c0] sm:$0xff]
    %v1019 = vld [vmem:[#allocation6 + $0x1c8] sm:$0xff]
    %v1020 = vmul.f32 %v106, %v1018
    %v1021 = vmul.f32 %v106, %v1019
    %v1022 = vadd.f32 %v1016, %v1020
    %v1023 = vadd.f32 %v1017, %v1021
    %v1024 = vadd.f32 %v1022, %v111
    %v1025 = vadd.f32 %v1023, %v111
    %v1026 = vmul.f32 %v1024, 0.2
    %v1027 = vmul.f32 %v1025, 0.2
    %v1028 = vmax.f32 %v1024, %v1026
    %v1029 = vmax.f32 %v1025, %v1027
    %v1030 = vld [vmem:[#allocation8 + $0x40] sm:$0xff]
    %v1032 = vlaneseq
    %v1033 = vshrl.u32 %v1032, 7
    %v1034 = vsub.s32 0, %v1033
    %v1035 = vrot.slane %v1030, %v1034
    %v1036 = vlaneseq
    %v1037 = vshrl.u32 %v1036, 7
    %v1038 = vsub.s32 1, %v1037
    %v1039 = vrot.slane %v1030, %v1038
    %v1040 = vlaneseq
    %v1041 = vshrl.u32 %v1040, 7
    %v1042 = vsub.s32 2, %v1041
    %v1043 = vrot.slane %v1030, %v1042
    %v1044 = vlaneseq
    %v1045 = vshrl.u32 %v1044, 7
    %v1046 = vsub.s32 3, %v1045
    %v1047 = vrot.slane %v1030, %v1046
    %v1048 = vlaneseq
    %v1049 = vshrl.u32 %v1048, 7
    %v1050 = vsub.s32 4, %v1049
    %v1051 = vrot.slane %v1030, %v1050
    %v1052 = vlaneseq
    %v1053 = vshrl.u32 %v1052, 7
    %v1054 = vsub.s32 5, %v1053
    %v1055 = vrot.slane %v1030, %v1054
    %v1056 = vlaneseq
    %v1057 = vshrl.u32 %v1056, 7
    %v1058 = vsub.s32 6, %v1057
    %v1059 = vrot.slane %v1030, %v1058
    %v1060 = vlaneseq
    %v1061 = vshrl.u32 %v1060, 7
    %v1062 = vsub.s32 7, %v1061
    %v1063 = vrot.slane %v1030, %v1062
    %v1064 = vcombine.low %v1035, %v1039
    %v1065 = vcombine.low %v1043, %v1047
    %v1067 = vunpack.c.l.s4 1983009808
    %v1068 = vunpack.c.0.s8 %v1067
    %v1069 = vlaneseq
    %v1070 = vshrl.u32 %v1069, 7
    %v1071 = vsub.s32 %v1068, %v1070
    %v1072 = vrot.slane %v1064, %v1071
    %v1074 = vunpack.c.l.s4 1983009808
    %v1075 = vunpack.c.0.s8 %v1074
    %v1076 = vlaneseq
    %v1077 = vshrl.u32 %v1076, 7
    %v1078 = vsub.s32 %v1075, %v1077
    %v1079 = vrot.slane %v1065, %v1078
    %v1080 = vcombine.low %v1072, %v1079
    %v1081 = vcombine.low %v1051, %v1055
    %v1082 = vcombine.low %v1059, %v1063
    %v1084 = vunpack.c.l.s4 1983009808
    %v1085 = vunpack.c.0.s8 %v1084
    %v1086 = vlaneseq
    %v1087 = vshrl.u32 %v1086, 7
    %v1088 = vsub.s32 %v1085, %v1087
    %v1089 = vrot.slane %v1081, %v1088
    %v1091 = vunpack.c.l.s4 1983009808
    %v1092 = vunpack.c.0.s8 %v1091
    %v1093 = vlaneseq
    %v1094 = vshrl.u32 %v1093, 7
    %v1095 = vsub.s32 %v1092, %v1094
    %v1096 = vrot.slane %v1082, %v1095
    %v1097 = vcombine.low %v1089, %v1096
    %v1100 = vmul.f32 %v1028, %v1080
    %v1101 = vmul.f32 %v1029, %v1097
    %v1102 = vadd.f32 %v988, %v1100
    %v1103 = vadd.f32 %v989, %v1101
    %v1104 = vld [vmem:[#allocation5 + $0x90] sm:$0xff]
    %v1105 = vld [vmem:[#allocation5 + $0x98] sm:$0xff]
    %v1106 = vmul.f32 %v73, %v1104
    %v1107 = vmul.f32 %v73, %v1105
    %v1108 = vld [vmem:[#allocation5 + $0x130] sm:$0xff]
    %v1109 = vld [vmem:[#allocation5 + $0x138] sm:$0xff]
    %v1110 = vmul.f32 %v78, %v1108
    %v1111 = vmul.f32 %v78, %v1109
    %v1112 = vadd.f32 %v1106, %v1110
    %v1113 = vadd.f32 %v1107, %v1111
    %v1114 = vld [vmem:[#allocation5 + $0x1d0] sm:$0xff]
    %v1115 = vld [vmem:[#allocation5 + $0x1d8] sm:$0xff]
    %v1116 = vmul.f32 %v85, %v1114
    %v1117 = vmul.f32 %v85, %v1115
    %v1118 = vadd.f32 %v1112, %v1116
    %v1119 = vadd.f32 %v1113, %v1117
    %v1120 = vld [vmem:[#allocation6 + $0x90] sm:$0xff]
    %v1121 = vld [vmem:[#allocation6 + $0x98] sm:$0xff]
    %v1122 = vmul.f32 %v92, %v1120
    %v1123 = vmul.f32 %v92, %v1121
    %v1124 = vadd.f32 %v1118, %v1122
    %v1125 = vadd.f32 %v1119, %v1123
    %v1126 = vld [vmem:[#allocation6 + $0x130] sm:$0xff]
    %v1127 = vld [vmem:[#allocation6 + $0x138] sm:$0xff]
    %v1128 = vmul.f32 %v99, %v1126
    %v1129 = vmul.f32 %v99, %v1127
    %v1130 = vadd.f32 %v1124, %v1128
    %v1131 = vadd.f32 %v1125, %v1129
    %v1132 = vld [vmem:[#allocation6 + $0x1d0] sm:$0xff]
    %v1133 = vld [vmem:[#allocation6 + $0x1d8] sm:$0xff]
    %v1134 = vmul.f32 %v106, %v1132
    %v1135 = vmul.f32 %v106, %v1133
    %v1136 = vadd.f32 %v1130, %v1134
    %v1137 = vadd.f32 %v1131, %v1135
    %v1138 = vadd.f32 %v1136, %v111
    %v1139 = vadd.f32 %v1137, %v111
    %v1140 = vmul.f32 %v1138, 0.2
    %v1141 = vmul.f32 %v1139, 0.2
    %v1142 = vmax.f32 %v1138, %v1140
    %v1143 = vmax.f32 %v1139, %v1141
    %v1144 = vld [vmem:[#allocation8 + $0x48] sm:$0xff]
    %v1146 = vlaneseq
    %v1147 = vshrl.u32 %v1146, 7
    %v1148 = vsub.s32 0, %v1147
    %v1149 = vrot.slane %v1144, %v1148
    %v1150 = vlaneseq
    %v1151 = vshrl.u32 %v1150, 7
    %v1152 = vsub.s32 1, %v1151
    %v1153 = vrot.slane %v1144, %v1152
    %v1154 = vlaneseq
    %v1155 = vshrl.u32 %v1154, 7
    %v1156 = vsub.s32 2, %v1155
    %v1157 = vrot.slane %v1144, %v1156
    %v1158 = vlaneseq
    %v1159 = vshrl.u32 %v1158, 7
    %v1160 = vsub.s32 3, %v1159
    %v1161 = vrot.slane %v1144, %v1160
    %v1162 = vlaneseq
    %v1163 = vshrl.u32 %v1162, 7
    %v1164 = vsub.s32 4, %v1163
    %v1165 = vrot.slane %v1144, %v1164
    %v1166 = vlaneseq
    %v1167 = vshrl.u32 %v1166, 7
    %v1168 = vsub.s32 5, %v1167
    %v1169 = vrot.slane %v1144, %v1168
    %v1170 = vlaneseq
    %v1171 = vshrl.u32 %v1170, 7
    %v1172 = vsub.s32 6, %v1171
    %v1173 = vrot.slane %v1144, %v1172
    %v1174 = vlaneseq
    %v1175 = vshrl.u32 %v1174, 7
    %v1176 = vsub.s32 7, %v1175
    %v1177 = vrot.slane %v1144, %v1176
    %v1178 = vcombine.low %v1149, %v1153
    %v1179 = vcombine.low %v1157, %v1161
    %v1181 = vunpack.c.l.s4 1983009808
    %v1182 = vunpack.c.0.s8 %v1181
    %v1183 = vlaneseq
    %v1184 = vshrl.u32 %v1183, 7
    %v1185 = vsub.s32 %v1182, %v1184
    %v1186 = vrot.slane %v1178, %v1185
    %v1188 = vunpack.c.l.s4 1983009808
    %v1189 = vunpack.c.0.s8 %v1188
    %v1190 = vlaneseq
    %v1191 = vshrl.u32 %v1190, 7
    %v1192 = vsub.s32 %v1189, %v1191
    %v1193 = vrot.slane %v1179, %v1192
    %v1194 = vcombine.low %v1186, %v1193
    %v1195 = vcombine.low %v1165, %v1169
    %v1196 = vcombine.low %v1173, %v1177
    %v1198 = vunpack.c.l.s4 1983009808
    %v1199 = vunpack.c.0.s8 %v1198
    %v1200 = vlaneseq
    %v1201 = vshrl.u32 %v1200, 7
    %v1202 = vsub.s32 %v1199, %v1201
    %v1203 = vrot.slane %v1195, %v1202
    %v1205 = vunpack.c.l.s4 1983009808
    %v1206 = vunpack.c.0.s8 %v1205
    %v1207 = vlaneseq
    %v1208 = vshrl.u32 %v1207, 7
    %v1209 = vsub.s32 %v1206, %v1208
    %v1210 = vrot.slane %v1196, %v1209
    %v1211 = vcombine.low %v1203, %v1210
    %v1214 = vmul.f32 %v1142, %v1194
    %v1215 = vmul.f32 %v1143, %v1211
    %v1216 = vadd.f32 %v1102, %v1214
    %v1217 = vadd.f32 %v1103, %v1215
    %v1220 = vcombine.high %v1216, %v1216
    %v1222 = vunpack.c.l.s4 1983009808
    %v1223 = vunpack.c.0.s8 %v1222
    %v1224 = vlaneseq
    %v1225 = vshrl.u32 %v1224, 7
    %v1226 = vsub.s32 %v1223, %v1225
    %v1227 = vrot.slane %v1216, %v1226
    %v1229 = vunpack.c.l.s4 1983009808
    %v1230 = vunpack.c.0.s8 %v1229
    %v1231 = vlaneseq
    %v1232 = vshrl.u32 %v1231, 7
    %v1233 = vsub.s32 %v1230, %v1232
    %v1234 = vrot.slane %v1220, %v1233
    %v1235 = vcombine.high %v1227, %v1227
    %v1236 = vcombine.high %v1234, %v1234
    %v1237 = vcombine.high %v1217, %v1217
    %v1239 = vunpack.c.l.s4 1983009808
    %v1240 = vunpack.c.0.s8 %v1239
    %v1241 = vlaneseq
    %v1242 = vshrl.u32 %v1241, 7
    %v1243 = vsub.s32 %v1240, %v1242
    %v1244 = vrot.slane %v1217, %v1243
    %v1246 = vunpack.c.l.s4 1983009808
    %v1247 = vunpack.c.0.s8 %v1246
    %v1248 = vlaneseq
    %v1249 = vshrl.u32 %v1248, 7
    %v1250 = vsub.s32 %v1247, %v1249
    %v1251 = vrot.slane %v1237, %v1250
    %v1252 = vcombine.high %v1244, %v1244
    %v1253 = vcombine.high %v1251, %v1251
    %vm1262 = vcmask 1041408
    %v1263 = vsel %vm1262, %v1227, 0.0
    %v1264 = vsel %vm1262, %v1235, 0.0
    %v1265 = vadd.f32 %v1263, %v1264
    %v1266 = vsel %vm1262, %v1234, 0.0
    %v1267 = vadd.f32 %v1265, %v1266
    %v1268 = vsel %vm1262, %v1236, 0.0
    %v1269 = vadd.f32 %v1267, %v1268
    %v1270 = vsel %vm1262, %v1244, 0.0
    %v1271 = vadd.f32 %v1269, %v1270
    %v1272 = vsel %vm1262, %v1252, 0.0
    %v1273 = vadd.f32 %v1271, %v1272
    %v1274 = vsel %vm1262, %v1251, 0.0
    %v1275 = vadd.f32 %v1273, %v1274
    %v1276 = vsel %vm1262, %v1253, 0.0
    %v1277 = vadd.f32 %v1275, %v1276
    %1278 = vadd.xlane.f32.xlu0 %v1277
    %v1279 = vpop.xlane.xlu0 %1278
    %v1280 = vstv %s70
    %v1281 = vadd.f32 %v1279, %v1280
    %v1282 = vxor.u32 %v1281, 2147483648
    %v1283 = vmul.f32 %v1282, 1.442695
    %v1284 = vpow.pop %v1283
    %v1285 = vadd.f32 %v1284, 1.0
    %v1286 = vrcp.pop %v1285
    %v1287 = vmul.f32 1.0, %v1286
    %vm1288 = vcmask 1024
    %1289 = vst.msk [vmem:[%s4] sm:$0x3] %vm1288, %v1287
    // Predicated region
    $region34: #{tpu_custom_call.1} parent=1 // pred_check
      _
    $region35: #{tpu_custom_call.1} parent=1 // pred_check_branch
      %1291 = sbr.rel (0) target = $region37
    $region36: #{tpu_custom_call.1} parent=1 // pred_region
      _
    $region37: #{tpu_custom_call.1} parent=1 // pred_fallthru
      _
    // Predicated region
    $region38: #{tpu_custom_call.1} parent=1 // pred_check
      _
    $region39: #{tpu_custom_call.1} parent=1 // pred_check_branch
      %1293 = sbr.rel (0) target = $region41
    $region40: #{tpu_custom_call.1} parent=1 // pred_region
      _
    $region41: #{tpu_custom_call.1} parent=1 // pred_fallthru
      _
    %1294 = vsyncpa [#allocation3], 1
    %1295 = vsyncpa [#allocation7], 1
    %1296 = vsyncpa [#allocation4], 1

</llo_original>
